<compile_context>
chip_gen: v5e
topology: v5e:2x2
jax: 0.10.0
libtpu: 0.0.40
codegen_flags: <defaults>
</compile_context>

<pallas_src>
import functools

import jax
import jax.numpy as jnp
from jax.experimental import pallas as pl
from jax.experimental.pallas import tpu as pltpu


def _grouped_conv_kernel(x_ref, w_ref, b_ref, o_ref, xpad_ref, *, shifts, hw, cin_g):
    # x_ref:    (G, Cin_g, HW)          one image, natural grouped layout.
    # w_ref:    (T*Cin_g, G, Cout_g, 1) per-(tap, in-offset) output-channel scales.
    # b_ref:    (G, Cout_g, 1)          bias.
    # o_ref:    (G, Cout_g, HW)         output in input-frame flat coordinates.
    # xpad_ref: (G, Cin_g, HW_pad)      VMEM scratch; zero tail makes every
    #                                   window shift an in-bounds lane slice.
    g, cout_g, _ = o_ref.shape

    # Zero the scratch (tail must not be stale), then drop the raw input into
    # the leading HW lanes.  Both stores are lane-aligned (HW % 128 == 0).
    xpad_ref[...] = jnp.zeros_like(xpad_ref)
    xpad_ref[:, :, :hw] = x_ref[...].astype(jnp.float32)
    xv = xpad_ref[...]                                    # (G, Cin_g, HW_pad) f32

    bias = b_ref[...].astype(jnp.float32)                 # (G, Cout_g, 1)

    # cin_g independent accumulator chains (ILP); bias folded into chain 0.
    accs = [jnp.broadcast_to(bias, (g, cout_g, hw)) if ci == 0
            else jnp.zeros((g, cout_g, hw), jnp.float32)
            for ci in range(cin_g)]

    # Static unrolled loop over the KH*KW taps: one static lane-shift slice of
    # the padded input per tap, then cin_g VPU broadcast-FMAs.
    # (Weights are re-read from VMEM per tap on purpose: pre-broadcasting all
    #  T*Cin_g (G, Cout_g, HW) scale planes would need far more live vregs
    #  than the 64 available.  If a bundle audit ever shows these unaligned
    #  lane slices materializing copies on 2-XLU parts, switch to
    #  pltpu.roll at full width — wrapped lanes only touch discarded outputs.)
    for t, s in enumerate(shifts):
        xs = xv[:, :, s:s + hw]                           # (G, Cin_g, HW)
        for ci in range(cin_g):
            w_tc = w_ref[t * cin_g + ci].astype(jnp.float32)   # (G, Cout_g, 1)
            # group -> Cout_g sublane broadcast of x, lane broadcast of w.
            accs[ci] = accs[ci] + xs[:, ci:ci + 1, :] * w_tc

    acc = accs[0]
    for ci in range(1, cin_g):
        acc = acc + accs[ci]
    o_ref[...] = acc.astype(o_ref.dtype)


def grouped_conv2d(x_nchw, weight, bias, *, groups, stride=1, padding=0, dilation=1):
    """Grouped conv2d forward matching nn.Conv2d semantics (NCHW in/out)."""
    N, Cin, H, W = x_nchw.shape
    Cout, Cin_g, KH, KW = weight.shape
    assert Cin % groups == 0 and Cout % groups == 0
    assert Cin // groups == Cin_g
    G, Cout_g = groups, Cout // groups
    T = KH * KW

    # Conv's own spatial zero padding (padding_mode='zeros').
    if padding:
        x_nchw = jnp.pad(
            x_nchw, ((0, 0), (0, 0), (padding, padding), (padding, padding)))
        H, W = H + 2 * padding, W + 2 * padding
    OH = (H - dilation * (KH - 1) - 1) // stride + 1
    OW = (W - dilation * (KW - 1) - 1) // stride + 1
    HW = H * W

    # Window shifts in flattened input-frame coordinates; scratch width so
    # every shift is an in-bounds lane slice (pad lives only in VMEM scratch).
    shifts = [kh * dilation * W + kw * dilation
              for kh in range(KH) for kw in range(KW)]
    HW_pad = ((HW + max(shifts) + 127) // 128) * 128

    # Free metadata reshape only — no replication, no extra HBM round trip.
    x_g = x_nchw.reshape(N, G, Cin_g, HW)
    # weight: (Cout, Cin_g, KH, KW) -> (T*Cin_g, G, Cout_g, 1); tiny (144 floats).
    w_b = (weight.reshape(G, Cout_g, Cin_g, T)
                 .transpose(3, 2, 0, 1)              # (T, Cin_g, G, Cout_g)
                 .reshape(T * Cin_g, G, Cout_g)[..., None])
    b_b = bias.reshape(G, Cout_g, 1)

    kernel = functools.partial(_grouped_conv_kernel,
                               shifts=shifts, hw=HW, cin_g=Cin_g)

    out = pl.pallas_call(
        kernel,
        out_shape=jax.ShapeDtypeStruct((N, G, Cout_g, HW), x_nchw.dtype),
        grid_spec=pltpu.PrefetchScalarGridSpec(
            num_scalar_prefetch=0,
            grid=(N,),
            in_specs=[
                pl.BlockSpec((None, G, Cin_g, HW), lambda n: (n, 0, 0, 0)),
                pl.BlockSpec((T * Cin_g, G, Cout_g, 1), lambda n: (0, 0, 0, 0)),
                pl.BlockSpec((G, Cout_g, 1), lambda n: (0, 0, 0)),
            ],
            out_specs=pl.BlockSpec((None, G, Cout_g, HW), lambda n: (n, 0, 0, 0)),
            scratch_shapes=[pltpu.VMEM((G, Cin_g, HW_pad), jnp.float32)],
        ),
        compiler_params=pltpu.CompilerParams(
            dimension_semantics=("parallel",)),
    )(x_g, w_b, b_b)

    # Input-frame flat coordinates -> NCHW, keep only the valid OHxOW region.
    # REQUIRED for correctness: the discarded border is wrap/pad contaminated.
    out_full = out.reshape(N, Cout, H, W)
    return out_full[:, :,
                    :(OH - 1) * stride + 1:stride,
                    :(OW - 1) * stride + 1:stride]


if __name__ == "__main__":
    # Module config (small, consistent with groups=4).
    number_of_groups = 4
    in_channels, out_channels, kernel_size = 8, 8, 3
    N, H, W = 2, 16, 16

    key = jax.random.PRNGKey(0)
    kx, kw, kb = jax.random.split(key, 3)

    # Deterministic param init matching nn.Conv2d default scale:
    # U(-bound, bound) with bound = 1/sqrt(fan_in), fan_in = (Cin/groups)*KH*KW.
    fan_in = (in_channels // number_of_groups) * kernel_size * kernel_size
    bound = 1.0 / (fan_in ** 0.5)
    weight = jax.random.uniform(
        kw, (out_channels, in_channels // number_of_groups, kernel_size, kernel_size),
        minval=-bound, maxval=bound, dtype=jnp.float32)
    bias = jax.random.uniform(kb, (out_channels,),
                              minval=-bound, maxval=bound, dtype=jnp.float32)
    x = jax.random.normal(kx, (N, in_channels, H, W), dtype=jnp.float32)

    conv = jax.jit(functools.partial(grouped_conv2d, groups=number_of_groups,
                                     stride=1, padding=0))
    y = jax.block_until_ready(conv(x, weight, bias))

    # Reference check against XLA's grouped conv.
    y_ref = jax.lax.conv_general_dilated(
        x, weight, window_strides=(1, 1), padding="VALID",
        dimension_numbers=("NCHW", "OIHW", "NCHW"),
        feature_group_count=number_of_groups) + bias[None, :, None, None]
    assert y.shape == (N, out_channels, H - kernel_size + 1, W - kernel_size + 1)
    assert jnp.allclose(y, y_ref, atol=1e-4, rtol=1e-4)

    print("KERNEL_OK")
</pallas_src>

<mosaic_0001>
module attributes {stable_mosaic.version = 11 : i64} {
  func.func @_grouped_conv_kernel(%arg0: i32, %arg1: memref<1x4x2x256xf32, #tpu.memory_space<vmem>>, %arg2: memref<18x4x2x1xf32, #tpu.memory_space<vmem>>, %arg3: memref<4x2x1xf32, #tpu.memory_space<vmem>>, %arg4: memref<1x4x2x256xf32, #tpu.memory_space<vmem>>, %arg5: memref<4x2x384xf32, #tpu.memory_space<vmem>>) attributes {dimension_semantics = [#tpu.dimension_semantics<parallel>], iteration_bounds = array<i64: 2>, scalar_prefetch = 0 : i64, scratch_operands = 1 : i64, tpu.core_type = #tpu.core_type<tc>, window_params = [{transform_indices = @transform_0, window_bounds = array<i64: 1, 4, 2, 256>}, {pipeline_mode = #tpu.pipeline_mode<synchronous>, transform_indices = @transform_1, window_bounds = array<i64: 18, 4, 2, 1>}, {pipeline_mode = #tpu.pipeline_mode<synchronous>, transform_indices = @transform_2, window_bounds = array<i64: 4, 2, 1>}, {transform_indices = @transform_3, window_bounds = array<i64: 1, 4, 2, 256>}]} {
    %cst = arith.constant 0.000000e+00 : f32
    %0 = vector.broadcast %cst : f32 to vector<4x2x384xf32>
    %c0 = arith.constant 0 : index
    %c0_0 = arith.constant 0 : index
    %c0_1 = arith.constant 0 : index
    %1 = vector.load %arg5[%c0, %c0_0, %c0_1] : memref<4x2x384xf32, #tpu.memory_space<vmem>>, vector<4x2x384xf32>
    tpu.vector_store %arg5[%c0, %c0_0, %c0_1], %0 {strides = array<i32>} : memref<4x2x384xf32, #tpu.memory_space<vmem>>, vector<4x2x384xf32>,
    %c0_2 = arith.constant 0 : index
    %c0_3 = arith.constant 0 : index
    %c0_4 = arith.constant 0 : index
    %c0_5 = arith.constant 0 : index
    %2 = vector.load %arg1[%c0_2, %c0_3, %c0_4, %c0_5] : memref<1x4x2x256xf32, #tpu.memory_space<vmem>>, vector<1x4x2x256xf32>
    %3 = vector.shape_cast %2 : vector<1x4x2x256xf32> to vector<4x2x256xf32>
    %c0_6 = arith.constant 0 : index
    %c0_7 = arith.constant 0 : index
    %c0_8 = arith.constant 0 : index
    %4 = vector.load %arg5[%c0_6, %c0_7, %c0_8] : memref<4x2x384xf32, #tpu.memory_space<vmem>>, vector<4x2x256xf32>
    tpu.vector_store %arg5[%c0_6, %c0_7, %c0_8], %3 {strides = array<i32>} : memref<4x2x384xf32, #tpu.memory_space<vmem>>, vector<4x2x256xf32>,
    %c0_9 = arith.constant 0 : index
    %c0_10 = arith.constant 0 : index
    %c0_11 = arith.constant 0 : index
    %5 = vector.load %arg5[%c0_9, %c0_10, %c0_11] : memref<4x2x384xf32, #tpu.memory_space<vmem>>, vector<4x2x384xf32>
    %c0_12 = arith.constant 0 : index
    %c0_13 = arith.constant 0 : index
    %c0_14 = arith.constant 0 : index
    %6 = vector.load %arg3[%c0_12, %c0_13, %c0_14] : memref<4x2x1xf32, #tpu.memory_space<vmem>>, vector<4x2x1xf32>
    %7 = vector.shape_cast %6 : vector<4x2x1xf32> to vector<4x2x1xf32>
    %8 = vector.broadcast %7 : vector<4x2x1xf32> to vector<4x2x256xf32>
    %cst_15 = arith.constant 0.000000e+00 : f32
    %9 = vector.broadcast %cst_15 : f32 to vector<4x2x256xf32>
    %10 = vector.extract_strided_slice %5 {offsets = [0, 0, 0], sizes = [4, 2, 256], strides = [1, 1, 1]} : vector<4x2x384xf32> to vector<4x2x256xf32>
    %c0_16 = arith.constant 0 : index
    %c0_17 = arith.constant 0 : index
    %c0_18 = arith.constant 0 : index
    %c0_19 = arith.constant 0 : index
    %11 = vector.load %arg2[%c0_16, %c0_17, %c0_18, %c0_19] : memref<18x4x2x1xf32, #tpu.memory_space<vmem>>, vector<1x4x2x1xf32>
    %12 = vector.shape_cast %11 : vector<1x4x2x1xf32> to vector<4x2x1xf32>
    %13 = vector.extract_strided_slice %10 {offsets = [0, 0, 0], sizes = [4, 1, 256], strides = [1, 1, 1]} : vector<4x2x256xf32> to vector<4x1x256xf32>
    %14 = vector.broadcast %13 : vector<4x1x256xf32> to vector<4x2x256xf32>
    %15 = vector.broadcast %12 : vector<4x2x1xf32> to vector<4x2x256xf32>
    %16 = arith.mulf %14, %15 : vector<4x2x256xf32>
    %17 = arith.addf %8, %16 : vector<4x2x256xf32>
    %c1 = arith.constant 1 : index
    %c0_20 = arith.constant 0 : index
    %c0_21 = arith.constant 0 : index
    %c0_22 = arith.constant 0 : index
    %18 = vector.load %arg2[%c1, %c0_20, %c0_21, %c0_22] : memref<18x4x2x1xf32, #tpu.memory_space<vmem>>, vector<1x4x2x1xf32>
    %19 = vector.shape_cast %18 : vector<1x4x2x1xf32> to vector<4x2x1xf32>
    %20 = vector.extract_strided_slice %10 {offsets = [0, 1, 0], sizes = [4, 1, 256], strides = [1, 1, 1]} : vector<4x2x256xf32> to vector<4x1x256xf32>
    %21 = vector.broadcast %20 : vector<4x1x256xf32> to vector<4x2x256xf32>
    %22 = vector.broadcast %19 : vector<4x2x1xf32> to vector<4x2x256xf32>
    %23 = arith.mulf %21, %22 : vector<4x2x256xf32>
    %24 = arith.addf %9, %23 : vector<4x2x256xf32>
    %25 = vector.extract_strided_slice %5 {offsets = [0, 0, 1], sizes = [4, 2, 256], strides = [1, 1, 1]} : vector<4x2x384xf32> to vector<4x2x256xf32>
    %c2 = arith.constant 2 : index
    %c0_23 = arith.constant 0 : index
    %c0_24 = arith.constant 0 : index
    %c0_25 = arith.constant 0 : index
    %26 = vector.load %arg2[%c2, %c0_23, %c0_24, %c0_25] : memref<18x4x2x1xf32, #tpu.memory_space<vmem>>, vector<1x4x2x1xf32>
    %27 = vector.shape_cast %26 : vector<1x4x2x1xf32> to vector<4x2x1xf32>
    %28 = vector.extract_strided_slice %25 {offsets = [0, 0, 0], sizes = [4, 1, 256], strides = [1, 1, 1]} : vector<4x2x256xf32> to vector<4x1x256xf32>
    %29 = vector.broadcast %28 : vector<4x1x256xf32> to vector<4x2x256xf32>
    %30 = vector.broadcast %27 : vector<4x2x1xf32> to vector<4x2x256xf32>
    %31 = arith.mulf %29, %30 : vector<4x2x256xf32>
    %32 = arith.addf %17, %31 : vector<4x2x256xf32>
    %c3 = arith.constant 3 : index
    %c0_26 = arith.constant 0 : index
    %c0_27 = arith.constant 0 : index
    %c0_28 = arith.constant 0 : index
    %33 = vector.load %arg2[%c3, %c0_26, %c0_27, %c0_28] : memref<18x4x2x1xf32, #tpu.memory_space<vmem>>, vector<1x4x2x1xf32>
    %34 = vector.shape_cast %33 : vector<1x4x2x1xf32> to vector<4x2x1xf32>
    %35 = vector.extract_strided_slice %25 {offsets = [0, 1, 0], sizes = [4, 1, 256], strides = [1, 1, 1]} : vector<4x2x256xf32> to vector<4x1x256xf32>
    %36 = vector.broadcast %35 : vector<4x1x256xf32> to vector<4x2x256xf32>
    %37 = vector.broadcast %34 : vector<4x2x1xf32> to vector<4x2x256xf32>
    %38 = arith.mulf %36, %37 : vector<4x2x256xf32>
    %39 = arith.addf %24, %38 : vector<4x2x256xf32>
    %40 = vector.extract_strided_slice %5 {offsets = [0, 0, 2], sizes = [4, 2, 256], strides = [1, 1, 1]} : vector<4x2x384xf32> to vector<4x2x256xf32>
    %c4 = arith.constant 4 : index
    %c0_29 = arith.constant 0 : index
    %c0_30 = arith.constant 0 : index
    %c0_31 = arith.constant 0 : index
    %41 = vector.load %arg2[%c4, %c0_29, %c0_30, %c0_31] : memref<18x4x2x1xf32, #tpu.memory_space<vmem>>, vector<1x4x2x1xf32>
    %42 = vector.shape_cast %41 : vector<1x4x2x1xf32> to vector<4x2x1xf32>
    %43 = vector.extract_strided_slice %40 {offsets = [0, 0, 0], sizes = [4, 1, 256], strides = [1, 1, 1]} : vector<4x2x256xf32> to vector<4x1x256xf32>
    %44 = vector.broadcast %43 : vector<4x1x256xf32> to vector<4x2x256xf32>
    %45 = vector.broadcast %42 : vector<4x2x1xf32> to vector<4x2x256xf32>
    %46 = arith.mulf %44, %45 : vector<4x2x256xf32>
    %47 = arith.addf %32, %46 : vector<4x2x256xf32>
    %c5 = arith.constant 5 : index
    %c0_32 = arith.constant 0 : index
    %c0_33 = arith.constant 0 : index
    %c0_34 = arith.constant 0 : index
    %48 = vector.load %arg2[%c5, %c0_32, %c0_33, %c0_34] : memref<18x4x2x1xf32, #tpu.memory_space<vmem>>, vector<1x4x2x1xf32>
    %49 = vector.shape_cast %48 : vector<1x4x2x1xf32> to vector<4x2x1xf32>
    %50 = vector.extract_strided_slice %40 {offsets = [0, 1, 0], sizes = [4, 1, 256], strides = [1, 1, 1]} : vector<4x2x256xf32> to vector<4x1x256xf32>
    %51 = vector.broadcast %50 : vector<4x1x256xf32> to vector<4x2x256xf32>
    %52 = vector.broadcast %49 : vector<4x2x1xf32> to vector<4x2x256xf32>
    %53 = arith.mulf %51, %52 : vector<4x2x256xf32>
    %54 = arith.addf %39, %53 : vector<4x2x256xf32>
    %55 = vector.extract_strided_slice %5 {offsets = [0, 0, 16], sizes = [4, 2, 256], strides = [1, 1, 1]} : vector<4x2x384xf32> to vector<4x2x256xf32>
    %c6 = arith.constant 6 : index
    %c0_35 = arith.constant 0 : index
    %c0_36 = arith.constant 0 : index
    %c0_37 = arith.constant 0 : index
    %56 = vector.load %arg2[%c6, %c0_35, %c0_36, %c0_37] : memref<18x4x2x1xf32, #tpu.memory_space<vmem>>, vector<1x4x2x1xf32>
    %57 = vector.shape_cast %56 : vector<1x4x2x1xf32> to vector<4x2x1xf32>
    %58 = vector.extract_strided_slice %55 {offsets = [0, 0, 0], sizes = [4, 1, 256], strides = [1, 1, 1]} : vector<4x2x256xf32> to vector<4x1x256xf32>
    %59 = vector.broadcast %58 : vector<4x1x256xf32> to vector<4x2x256xf32>
    %60 = vector.broadcast %57 : vector<4x2x1xf32> to vector<4x2x256xf32>
    %61 = arith.mulf %59, %60 : vector<4x2x256xf32>
    %62 = arith.addf %47, %61 : vector<4x2x256xf32>
    %c7 = arith.constant 7 : index
    %c0_38 = arith.constant 0 : index
    %c0_39 = arith.constant 0 : index
    %c0_40 = arith.constant 0 : index
    %63 = vector.load %arg2[%c7, %c0_38, %c0_39, %c0_40] : memref<18x4x2x1xf32, #tpu.memory_space<vmem>>, vector<1x4x2x1xf32>
    %64 = vector.shape_cast %63 : vector<1x4x2x1xf32> to vector<4x2x1xf32>
    %65 = vector.extract_strided_slice %55 {offsets = [0, 1, 0], sizes = [4, 1, 256], strides = [1, 1, 1]} : vector<4x2x256xf32> to vector<4x1x256xf32>
    %66 = vector.broadcast %65 : vector<4x1x256xf32> to vector<4x2x256xf32>
    %67 = vector.broadcast %64 : vector<4x2x1xf32> to vector<4x2x256xf32>
    %68 = arith.mulf %66, %67 : vector<4x2x256xf32>
    %69 = arith.addf %54, %68 : vector<4x2x256xf32>
    %70 = vector.extract_strided_slice %5 {offsets = [0, 0, 17], sizes = [4, 2, 256], strides = [1, 1, 1]} : vector<4x2x384xf32> to vector<4x2x256xf32>
    %c8 = arith.constant 8 : index
    %c0_41 = arith.constant 0 : index
    %c0_42 = arith.constant 0 : index
    %c0_43 = arith.constant 0 : index
    %71 = vector.load %arg2[%c8, %c0_41, %c0_42, %c0_43] : memref<18x4x2x1xf32, #tpu.memory_space<vmem>>, vector<1x4x2x1xf32>
    %72 = vector.shape_cast %71 : vector<1x4x2x1xf32> to vector<4x2x1xf32>
    %73 = vector.extract_strided_slice %70 {offsets = [0, 0, 0], sizes = [4, 1, 256], strides = [1, 1, 1]} : vector<4x2x256xf32> to vector<4x1x256xf32>
    %74 = vector.broadcast %73 : vector<4x1x256xf32> to vector<4x2x256xf32>
    %75 = vector.broadcast %72 : vector<4x2x1xf32> to vector<4x2x256xf32>
    %76 = arith.mulf %74, %75 : vector<4x2x256xf32>
    %77 = arith.addf %62, %76 : vector<4x2x256xf32>
    %c9 = arith.constant 9 : index
    %c0_44 = arith.constant 0 : index
    %c0_45 = arith.constant 0 : index
    %c0_46 = arith.constant 0 : index
    %78 = vector.load %arg2[%c9, %c0_44, %c0_45, %c0_46] : memref<18x4x2x1xf32, #tpu.memory_space<vmem>>, vector<1x4x2x1xf32>
    %79 = vector.shape_cast %78 : vector<1x4x2x1xf32> to vector<4x2x1xf32>
    %80 = vector.extract_strided_slice %70 {offsets = [0, 1, 0], sizes = [4, 1, 256], strides = [1, 1, 1]} : vector<4x2x256xf32> to vector<4x1x256xf32>
    %81 = vector.broadcast %80 : vector<4x1x256xf32> to vector<4x2x256xf32>
    %82 = vector.broadcast %79 : vector<4x2x1xf32> to vector<4x2x256xf32>
    %83 = arith.mulf %81, %82 : vector<4x2x256xf32>
    %84 = arith.addf %69, %83 : vector<4x2x256xf32>
    %85 = vector.extract_strided_slice %5 {offsets = [0, 0, 18], sizes = [4, 2, 256], strides = [1, 1, 1]} : vector<4x2x384xf32> to vector<4x2x256xf32>
    %c10 = arith.constant 10 : index
    %c0_47 = arith.constant 0 : index
    %c0_48 = arith.constant 0 : index
    %c0_49 = arith.constant 0 : index
    %86 = vector.load %arg2[%c10, %c0_47, %c0_48, %c0_49] : memref<18x4x2x1xf32, #tpu.memory_space<vmem>>, vector<1x4x2x1xf32>
    %87 = vector.shape_cast %86 : vector<1x4x2x1xf32> to vector<4x2x1xf32>
    %88 = vector.extract_strided_slice %85 {offsets = [0, 0, 0], sizes = [4, 1, 256], strides = [1, 1, 1]} : vector<4x2x256xf32> to vector<4x1x256xf32>
    %89 = vector.broadcast %88 : vector<4x1x256xf32> to vector<4x2x256xf32>
    %90 = vector.broadcast %87 : vector<4x2x1xf32> to vector<4x2x256xf32>
    %91 = arith.mulf %89, %90 : vector<4x2x256xf32>
    %92 = arith.addf %77, %91 : vector<4x2x256xf32>
    %c11 = arith.constant 11 : index
    %c0_50 = arith.constant 0 : index
    %c0_51 = arith.constant 0 : index
    %c0_52 = arith.constant 0 : index
    %93 = vector.load %arg2[%c11, %c0_50, %c0_51, %c0_52] : memref<18x4x2x1xf32, #tpu.memory_space<vmem>>, vector<1x4x2x1xf32>
    %94 = vector.shape_cast %93 : vector<1x4x2x1xf32> to vector<4x2x1xf32>
    %95 = vector.extract_strided_slice %85 {offsets = [0, 1, 0], sizes = [4, 1, 256], strides = [1, 1, 1]} : vector<4x2x256xf32> to vector<4x1x256xf32>
    %96 = vector.broadcast %95 : vector<4x1x256xf32> to vector<4x2x256xf32>
    %97 = vector.broadcast %94 : vector<4x2x1xf32> to vector<4x2x256xf32>
    %98 = arith.mulf %96, %97 : vector<4x2x256xf32>
    %99 = arith.addf %84, %98 : vector<4x2x256xf32>
    %100 = vector.extract_strided_slice %5 {offsets = [0, 0, 32], sizes = [4, 2, 256], strides = [1, 1, 1]} : vector<4x2x384xf32> to vector<4x2x256xf32>
    %c12 = arith.constant 12 : index
    %c0_53 = arith.constant 0 : index
    %c0_54 = arith.constant 0 : index
    %c0_55 = arith.constant 0 : index
    %101 = vector.load %arg2[%c12, %c0_53, %c0_54, %c0_55] : memref<18x4x2x1xf32, #tpu.memory_space<vmem>>, vector<1x4x2x1xf32>
    %102 = vector.shape_cast %101 : vector<1x4x2x1xf32> to vector<4x2x1xf32>
    %103 = vector.extract_strided_slice %100 {offsets = [0, 0, 0], sizes = [4, 1, 256], strides = [1, 1, 1]} : vector<4x2x256xf32> to vector<4x1x256xf32>
    %104 = vector.broadcast %103 : vector<4x1x256xf32> to vector<4x2x256xf32>
    %105 = vector.broadcast %102 : vector<4x2x1xf32> to vector<4x2x256xf32>
    %106 = arith.mulf %104, %105 : vector<4x2x256xf32>
    %107 = arith.addf %92, %106 : vector<4x2x256xf32>
    %c13 = arith.constant 13 : index
    %c0_56 = arith.constant 0 : index
    %c0_57 = arith.constant 0 : index
    %c0_58 = arith.constant 0 : index
    %108 = vector.load %arg2[%c13, %c0_56, %c0_57, %c0_58] : memref<18x4x2x1xf32, #tpu.memory_space<vmem>>, vector<1x4x2x1xf32>
    %109 = vector.shape_cast %108 : vector<1x4x2x1xf32> to vector<4x2x1xf32>
    %110 = vector.extract_strided_slice %100 {offsets = [0, 1, 0], sizes = [4, 1, 256], strides = [1, 1, 1]} : vector<4x2x256xf32> to vector<4x1x256xf32>
    %111 = vector.broadcast %110 : vector<4x1x256xf32> to vector<4x2x256xf32>
    %112 = vector.broadcast %109 : vector<4x2x1xf32> to vector<4x2x256xf32>
    %113 = arith.mulf %111, %112 : vector<4x2x256xf32>
    %114 = arith.addf %99, %113 : vector<4x2x256xf32>
    %115 = vector.extract_strided_slice %5 {offsets = [0, 0, 33], sizes = [4, 2, 256], strides = [1, 1, 1]} : vector<4x2x384xf32> to vector<4x2x256xf32>
    %c14 = arith.constant 14 : index
    %c0_59 = arith.constant 0 : index
    %c0_60 = arith.constant 0 : index
    %c0_61 = arith.constant 0 : index
    %116 = vector.load %arg2[%c14, %c0_59, %c0_60, %c0_61] : memref<18x4x2x1xf32, #tpu.memory_space<vmem>>, vector<1x4x2x1xf32>
    %117 = vector.shape_cast %116 : vector<1x4x2x1xf32> to vector<4x2x1xf32>
    %118 = vector.extract_strided_slice %115 {offsets = [0, 0, 0], sizes = [4, 1, 256], strides = [1, 1, 1]} : vector<4x2x256xf32> to vector<4x1x256xf32>
    %119 = vector.broadcast %118 : vector<4x1x256xf32> to vector<4x2x256xf32>
    %120 = vector.broadcast %117 : vector<4x2x1xf32> to vector<4x2x256xf32>
    %121 = arith.mulf %119, %120 : vector<4x2x256xf32>
    %122 = arith.addf %107, %121 : vector<4x2x256xf32>
    %c15 = arith.constant 15 : index
    %c0_62 = arith.constant 0 : index
    %c0_63 = arith.constant 0 : index
    %c0_64 = arith.constant 0 : index
    %123 = vector.load %arg2[%c15, %c0_62, %c0_63, %c0_64] : memref<18x4x2x1xf32, #tpu.memory_space<vmem>>, vector<1x4x2x1xf32>
    %124 = vector.shape_cast %123 : vector<1x4x2x1xf32> to vector<4x2x1xf32>
    %125 = vector.extract_strided_slice %115 {offsets = [0, 1, 0], sizes = [4, 1, 256], strides = [1, 1, 1]} : vector<4x2x256xf32> to vector<4x1x256xf32>
    %126 = vector.broadcast %125 : vector<4x1x256xf32> to vector<4x2x256xf32>
    %127 = vector.broadcast %124 : vector<4x2x1xf32> to vector<4x2x256xf32>
    %128 = arith.mulf %126, %127 : vector<4x2x256xf32>
    %129 = arith.addf %114, %128 : vector<4x2x256xf32>
    %130 = vector.extract_strided_slice %5 {offsets = [0, 0, 34], sizes = [4, 2, 256], strides = [1, 1, 1]} : vector<4x2x384xf32> to vector<4x2x256xf32>
    %c16 = arith.constant 16 : index
    %c0_65 = arith.constant 0 : index
    %c0_66 = arith.constant 0 : index
    %c0_67 = arith.constant 0 : index
    %131 = vector.load %arg2[%c16, %c0_65, %c0_66, %c0_67] : memref<18x4x2x1xf32, #tpu.memory_space<vmem>>, vector<1x4x2x1xf32>
    %132 = vector.shape_cast %131 : vector<1x4x2x1xf32> to vector<4x2x1xf32>
    %133 = vector.extract_strided_slice %130 {offsets = [0, 0, 0], sizes = [4, 1, 256], strides = [1, 1, 1]} : vector<4x2x256xf32> to vector<4x1x256xf32>
    %134 = vector.broadcast %133 : vector<4x1x256xf32> to vector<4x2x256xf32>
    %135 = vector.broadcast %132 : vector<4x2x1xf32> to vector<4x2x256xf32>
    %136 = arith.mulf %134, %135 : vector<4x2x256xf32>
    %137 = arith.addf %122, %136 : vector<4x2x256xf32>
    %c17 = arith.constant 17 : index
    %c0_68 = arith.constant 0 : index
    %c0_69 = arith.constant 0 : index
    %c0_70 = arith.constant 0 : index
    %138 = vector.load %arg2[%c17, %c0_68, %c0_69, %c0_70] : memref<18x4x2x1xf32, #tpu.memory_space<vmem>>, vector<1x4x2x1xf32>
    %139 = vector.shape_cast %138 : vector<1x4x2x1xf32> to vector<4x2x1xf32>
    %140 = vector.extract_strided_slice %130 {offsets = [0, 1, 0], sizes = [4, 1, 256], strides = [1, 1, 1]} : vector<4x2x256xf32> to vector<4x1x256xf32>
    %141 = vector.broadcast %140 : vector<4x1x256xf32> to vector<4x2x256xf32>
    %142 = vector.broadcast %139 : vector<4x2x1xf32> to vector<4x2x256xf32>
    %143 = arith.mulf %141, %142 : vector<4x2x256xf32>
    %144 = arith.addf %129, %143 : vector<4x2x256xf32>
    %145 = arith.addf %137, %144 : vector<4x2x256xf32>
    %c0_71 = arith.constant 0 : index
    %c0_72 = arith.constant 0 : index
    %c0_73 = arith.constant 0 : index
    %c0_74 = arith.constant 0 : index
    %146 = vector.load %arg4[%c0_71, %c0_72, %c0_73, %c0_74] : memref<1x4x2x256xf32, #tpu.memory_space<vmem>>, vector<1x4x2x256xf32>
    %147 = vector.shape_cast %146 : vector<1x4x2x256xf32> to vector<4x2x256xf32>
    %148 = vector.shape_cast %145 : vector<4x2x256xf32> to vector<1x4x2x256xf32>
    tpu.vector_store %arg4[%c0_71, %c0_72, %c0_73, %c0_74], %148 {strides = array<i32>} : memref<1x4x2x256xf32, #tpu.memory_space<vmem>>, vector<1x4x2x256xf32>,
    return
  }
  func.func @transform_0(%arg0: i32) -> (i32, i32, i32, i32) {
    %c0_i32 = arith.constant 0 : i32
    %c0_i32_0 = arith.constant 0 : i32
    %c0_i32_1 = arith.constant 0 : i32
    %c0_i32_2 = arith.constant 0 : i32
    return %arg0, %c0_i32, %c0_i32_0, %c0_i32_1 : i32, i32, i32, i32
  }
  func.func @transform_1(%arg0: i32) -> (i32, i32, i32, i32) {
    %c0_i32 = arith.constant 0 : i32
    %c0_i32_0 = arith.constant 0 : i32
    %c0_i32_1 = arith.constant 0 : i32
    %c0_i32_2 = arith.constant 0 : i32
    %c0_i32_3 = arith.constant 0 : i32
    return %c0_i32, %c0_i32_0, %c0_i32_1, %c0_i32_2 : i32, i32, i32, i32
  }
  func.func @transform_2(%arg0: i32) -> (i32, i32, i32) {
    %c0_i32 = arith.constant 0 : i32
    %c0_i32_0 = arith.constant 0 : i32
    %c0_i32_1 = arith.constant 0 : i32
    %c0_i32_2 = arith.constant 0 : i32
    return %c0_i32, %c0_i32_0, %c0_i32_1 : i32, i32, i32
  }
  func.func @transform_3(%arg0: i32) -> (i32, i32, i32, i32) {
    %c0_i32 = arith.constant 0 : i32
    %c0_i32_0 = arith.constant 0 : i32
    %c0_i32_1 = arith.constant 0 : i32
    %c0_i32_2 = arith.constant 0 : i32
    return %arg0, %c0_i32, %c0_i32_0, %c0_i32_1 : i32, i32, i32, i32
  }
}

</mosaic_0001>

<llo_original>
// kernel: grouped_conv2d.1
$region0: #{grouped_conv2d.1}
  #allocation0 [shape = 'u32[]', space=smem, size = 0x4, offset = 0x4, fixed_abs, tag = 'smem constant byte address 0x4 - core index']
  #allocation1 [shape = 'u32[72,128]{1,0:T(1,128)}', space=vmem, size = 0x9000, scoped, tag = 'internal scratch']
  #allocation2 [shape = 'f32[4,2,384]{2,1,0:T(2,128)}', space=vmem, size = 0x3000, scoped, tag = 'scratch operand']
  %s0 = inlined_call_operand.vmem [shape: f32[2,4,2,256], index: 0, kind: input, shape index: {}]
  %s1 = inlined_call_operand.vmem [shape: f32[18,4,2,1], index: 1, kind: input, shape index: {}]
  %s2 = inlined_call_operand.vmem [shape: f32[4,2,1], index: 2, kind: input, shape index: {}]
  %s3 = inlined_call_operand.vmem [shape: f32[2,4,2,256], index: 3, kind: output, shape index: {}]
  %s4 = sld [smem:[#allocation0]]
  $region45: #{grouped_conv2d.1} parent=0
    _
  %s6 = ssub.s32 1, %s4
  %s7 = scalar_select 0, %s6, %s4
  loop: start=0, step=1, limit=4
  $region2: #{grouped_conv2d.1} parent=0 // loop_pre_header
    _
  $region3: #{grouped_conv2d.1} parent=0 // loop_header
    %s9 = sphi 0, %s13
    %p10 = scmp.ge.s32.totalorder %s9, 4
    %s19 = sphi 0, %s21
    %s22 = sphi 0, %s19
    %s23 = sphi 0, %s22
    %s39 = sphi 0, %s23
    %s43 = sphi 0, %s43
    %s45 = sphi 0, %s43
    %s46 = sphi 0, %s45
    %s60 = sphi 0, %s46
    %s64 = sphi 0, %s64
    %s66 = sphi 0, %s64
    %s67 = sphi 0, %s66
    %s81 = sphi 0, %s67
    %s87 = sphi 0, %s89
    %s90 = sphi 0, %s87
    %s91 = sphi 0, %s90
    %s107 = sphi 0, %s91
  $region4: #{grouped_conv2d.1} parent=0 // loop_header_branch
    %12 = sbr.rel (%p10) target = $region8
  $region5: #{grouped_conv2d.1} parent=0 // loop_body
    %s14 = ssub.s32 %s9, 1
    %s15 = ssub.s32 %s9, 2
    %s16 = sadd.s32 %s9, 1
    %s17 = ssub.s32 %s9, %s16
    %p18 = scmp.eq.s32.totalorder %s17, 0
    %s20 = sadd.s32 %s19, 1
    %s21 = scalar_select %p18, %s19, %s20
    %p24 = pneg %p18
    %p25 = scmp.eq.s32.totalorder %s9, 1
    %p26 = por %p24, %p25
    %p27 = scmp.ne.s32.totalorder %s19, %s22
    %p28 = scmp.eq.s32.totalorder %s9, 0
    %p29 = por %p27, %p28
    %p30 = scmp.ne.s32.totalorder %s19, %s22
    %p31 = scmp.eq.s32.totalorder %s14, 1
    %p32 = por %p30, %p31
    %p33 = scmp.ne.s32.totalorder %s22, %s23
    %p34 = scmp.eq.s32.totalorder %s14, 0
    %p35 = por %p33, %p34
    %p36 = scmp.ne.s32.totalorder %s22, %s23
    %p37 = scmp.eq.s32.totalorder %s15, 1
    %p38 = por %p36, %p37
    %p40 = scmp.ne.s32.totalorder %s23, %s39
    %p41 = scmp.eq.s32.totalorder %s15, 0
    %p42 = por %p40, %p41
    %s44 = sadd.s32 %s43, 1
    %p47 = scmp.eq.s32.totalorder %s9, 1
    %p48 = scmp.ne.s32.totalorder %s43, %s45
    %p49 = scmp.eq.s32.totalorder %s9, 0
    %p50 = por %p48, %p49
    %p51 = scmp.ne.s32.totalorder %s43, %s45
    %p52 = scmp.eq.s32.totalorder %s14, 1
    %p53 = por %p51, %p52
    %p54 = scmp.ne.s32.totalorder %s45, %s46
    %p55 = scmp.eq.s32.totalorder %s14, 0
    %p56 = por %p54, %p55
    %p57 = scmp.ne.s32.totalorder %s45, %s46
    %p58 = scmp.eq.s32.totalorder %s15, 1
    %p59 = por %p57, %p58
    %p61 = scmp.ne.s32.totalorder %s46, %s60
    %p62 = scmp.eq.s32.totalorder %s15, 0
    %p63 = por %p61, %p62
    %s65 = sadd.s32 %s64, 1
    %p68 = scmp.eq.s32.totalorder %s9, 1
    %p69 = scmp.ne.s32.totalorder %s64, %s66
    %p70 = scmp.eq.s32.totalorder %s9, 0
    %p71 = por %p69, %p70
    %p72 = scmp.ne.s32.totalorder %s64, %s66
    %p73 = scmp.eq.s32.totalorder %s14, 1
    %p74 = por %p72, %p73
    %p75 = scmp.ne.s32.totalorder %s66, %s67
    %p76 = scmp.eq.s32.totalorder %s14, 0
    %p77 = por %p75, %p76
    %p78 = scmp.ne.s32.totalorder %s66, %s67
    %p79 = scmp.eq.s32.totalorder %s15, 1
    %p80 = por %p78, %p79
    %p82 = scmp.ne.s32.totalorder %s67, %s81
    %p83 = scmp.eq.s32.totalorder %s15, 0
    %p84 = por %p82, %p83
    %s85 = ssub.s32 %s9, %s16
    %p86 = scmp.eq.s32.totalorder %s85, 0
    %s88 = sadd.s32 %s87, 1
    %s89 = scalar_select %p86, %s87, %s88
    %p92 = pneg %p86
    %p93 = scmp.eq.s32.totalorder %s9, 1
    %p94 = por %p92, %p93
    %p95 = scmp.ne.s32.totalorder %s87, %s90
    %p96 = scmp.eq.s32.totalorder %s9, 0
    %p97 = por %p95, %p96
    %p98 = scmp.ne.s32.totalorder %s87, %s90
    %p99 = scmp.eq.s32.totalorder %s14, 1
    %p100 = por %p98, %p99
    %p101 = scmp.ne.s32.totalorder %s90, %s91
    %p102 = scmp.eq.s32.totalorder %s14, 0
    %p103 = por %p101, %p102
    %p104 = scmp.ne.s32.totalorder %s90, %s91
    %p105 = scmp.eq.s32.totalorder %s15, 1
    %p106 = por %p104, %p105
    %p108 = scmp.ne.s32.totalorder %s91, %s107
    %p109 = scmp.eq.s32.totalorder %s15, 0
    %p110 = por %p108, %p109
    %p111 = scmp.le.s32.totalorder 1, %s9
    %p112 = scmp.lt.s32.totalorder %s9, 3
    %p113 = pnand %p111, %p112
    %p114 = pneg %p113
    // Predicated region
    $region9: #{grouped_conv2d.1} parent=5 // pred_check
      _
    $region10: #{grouped_conv2d.1} parent=5 // pred_check_branch
      %116 = sbr.rel (%p113) target = $region12
    $region11: #{grouped_conv2d.1} parent=5 // pred_region
      %s117 = ssub.s32 %s9, 1
      // Predicated region
      $region13: #{grouped_conv2d.1} parent=11 // pred_check
        %p118 = pneg %p56
      $region14: #{grouped_conv2d.1} parent=11 // pred_check_branch
        %120 = sbr.rel (%p118) target = $region16
      $region15: #{grouped_conv2d.1} parent=11 // pred_region
        _
      $region16: #{grouped_conv2d.1} parent=11 // pred_fallthru
        _
      // Predicated region
      $region17: #{grouped_conv2d.1} parent=11 // pred_check
        %p121 = pneg %p77
      $region18: #{grouped_conv2d.1} parent=11 // pred_check_branch
        %123 = sbr.rel (%p121) target = $region20
      $region19: #{grouped_conv2d.1} parent=11 // pred_region
        _
      $region20: #{grouped_conv2d.1} parent=11 // pred_fallthru
        _
    $region12: #{grouped_conv2d.1} parent=5 // pred_fallthru
      _
    %p124 = scmp.lt.s32.totalorder %s9, 2
    // Predicated region
    $region21: #{grouped_conv2d.1} parent=5 // pred_check
      %p125 = pneg %p124
    $region22: #{grouped_conv2d.1} parent=5 // pred_check_branch
      %127 = sbr.rel (%p125) target = $region24
    $region23: #{grouped_conv2d.1} parent=5 // pred_region
      // Predicated region
      $region25: #{grouped_conv2d.1} parent=23 // pred_check
        %p128 = pneg %p29
      $region26: #{grouped_conv2d.1} parent=23 // pred_check_branch
        %130 = sbr.rel (%p128) target = $region28
      $region27: #{grouped_conv2d.1} parent=23 // pred_region
        %p131 = scmp.lt.s32.totalorder %s9, 1
        %s132 = scalar_select %p131, %s9, 1
        %s133 = smul.addr %s132, 8
        %s134 = smul.addr %s133, 2
        %s135 = scalar_lea.vmem %s0, %s134
      $region28: #{grouped_conv2d.1} parent=23 // pred_fallthru
        _
    $region24: #{grouped_conv2d.1} parent=5 // pred_fallthru
      _
    %p136 = scmp.le.s32.totalorder 1, %s9
    %p137 = scmp.lt.s32.totalorder %s9, 3
    %p138 = pnand %p136, %p137
    %p139 = pneg %p138
    // Predicated region
    $region29: #{grouped_conv2d.1} parent=5 // pred_check
      _
    $region30: #{grouped_conv2d.1} parent=5 // pred_check_branch
      %141 = sbr.rel (%p138) target = $region32
    $region31: #{grouped_conv2d.1} parent=5 // pred_region
      %s142 = ssub.s32 %s9, 1
      %p143 = scmp.lt.s32.totalorder %s14, 1
      %s144 = scalar_select %p143, %s14, 1
      %s145 = smul.addr %s144, 8
      %s146 = smul.addr %s145, 2
      %s147 = scalar_lea.vmem %s0, %s146
      %p148 = pneg %p35
      %p149 = pneg %p32
      %p150 = pneg %p56
      %p151 = pneg %p53
      %p152 = pneg %p77
      %p153 = pneg %p74
      %p154 = pneg %p103
      %p155 = pneg %p100
      %p156 = scmp.lt.s32.totalorder %s14, 1
      %s157 = scalar_select %p156, %s14, 1
      %s158 = smul.addr %s157, 8
      %s159 = smul.addr %s158, 2
      %s160 = scalar_lea.vmem %s3, %s159
      %p161 = scmp.lt.s32.totalorder %s14, 1
      %s162 = scalar_select %p161, %s14, 1
      %s163 = smul.addr %s162, 8
      %s164 = smul.addr %s163, 2
      %s165 = scalar_lea.vmem %s0, %s164
      %p166 = scmp.lt.s32.totalorder %s14, 1
      %s167 = scalar_select %p166, %s14, 1
      %s168 = smul.addr %s167, 8
      %s169 = smul.addr %s168, 2
      %s170 = scalar_lea.vmem %s3, %s169
      %171 = vst [vmem:[#allocation2] sm:$0x3f] 0.0
      %172 = vst [vmem:[#allocation2 + $0x6] sm:$0x3f] 0.0
      %173 = vst [vmem:[#allocation2 + $0xc] sm:$0x3f] 0.0
      %174 = vst [vmem:[#allocation2 + $0x12] sm:$0x3f] 0.0
      %v175 = vld [vmem:[%s165] sm:$0xf]
      %v176 = vld [vmem:[%s165 + $0x4] sm:$0xf]
      %v177 = vld [vmem:[%s165 + $0x8] sm:$0xf]
      %v178 = vld [vmem:[%s165 + $0xc] sm:$0xf]
      %179 = vst [vmem:[#allocation2] sm:$0xf] %v175
      %180 = vst [vmem:[#allocation2 + $0x6] sm:$0xf] %v176
      %181 = vst [vmem:[#allocation2 + $0xc] sm:$0xf] %v177
      %182 = vst [vmem:[#allocation2 + $0x12] sm:$0xf] %v178
      %v183 = vld [vmem:[#allocation2] sm:$0x3f]
      %v184 = vld [vmem:[#allocation2 + $0x6] sm:$0x3f]
      %v185 = vld [vmem:[#allocation2 + $0xc] sm:$0x3f]
      %v186 = vld [vmem:[#allocation2 + $0x12] sm:$0x3f]
      %v187 = vld [vmem:[%s2] sm:$0x3]
      %v188 = vld [vmem:[%s2 + $0x2] sm:$0x3]
      %v189 = vld [vmem:[%s2 + $0x4] sm:$0x3]
      %v190 = vld [vmem:[%s2 + $0x6] sm:$0x3]
      %192 = vset.pattern.permute.xlu0 0
      %193 = vperm.xlu0 %192, %v187
      %v194 = vpop.permute.xlu0 %193
      %197 = vset.pattern.permute.xlu0 0
      %198 = vperm.xlu0 %197, %v188
      %v199 = vpop.permute.xlu0 %198
      %202 = vset.pattern.permute.xlu0 0
      %203 = vperm.xlu0 %202, %v189
      %v204 = vpop.permute.xlu0 %203
      %207 = vset.pattern.permute.xlu0 0
      %208 = vperm.xlu0 %207, %v190
      %v209 = vpop.permute.xlu0 %208
      %v211 = vld [vmem:[%s1] sm:$0x3]
      %v212 = vld [vmem:[%s1 + $0x2] sm:$0x3]
      %v213 = vld [vmem:[%s1 + $0x4] sm:$0x3]
      %v214 = vld [vmem:[%s1 + $0x6] sm:$0x3]
      %v219 = vperm.slane %v183, 0
      %v220 = vperm.slane %v183, 2
      %v221 = vperm.slane %v184, 0
      %v222 = vperm.slane %v184, 2
      %v223 = vperm.slane %v185, 0
      %v224 = vperm.slane %v185, 2
      %v225 = vperm.slane %v186, 0
      %v226 = vperm.slane %v186, 2
      %v235 = vperm.slane %v219, 0
      %v236 = vperm.slane %v220, 0
      %v237 = vperm.slane %v221, 0
      %v238 = vperm.slane %v222, 0
      %v239 = vperm.slane %v223, 0
      %v240 = vperm.slane %v224, 0
      %v241 = vperm.slane %v225, 0
      %v242 = vperm.slane %v226, 0
      %244 = vset.pattern.permute.xlu0 0
      %245 = vperm.xlu0 %244, %v211
      %v246 = vpop.permute.xlu0 %245
      %249 = vset.pattern.permute.xlu0 0
      %250 = vperm.xlu0 %249, %v212
      %v251 = vpop.permute.xlu0 %250
      %254 = vset.pattern.permute.xlu0 0
      %255 = vperm.xlu0 %254, %v213
      %v256 = vpop.permute.xlu0 %255
      %259 = vset.pattern.permute.xlu0 0
      %260 = vperm.xlu0 %259, %v214
      %v261 = vpop.permute.xlu0 %260
      %v263 = vmul.f32 %v235, %v246
      %v264 = vmul.f32 %v236, %v246
      %v265 = vmul.f32 %v237, %v251
      %v266 = vmul.f32 %v238, %v251
      %v267 = vmul.f32 %v239, %v256
      %v268 = vmul.f32 %v240, %v256
      %v269 = vmul.f32 %v241, %v261
      %v270 = vmul.f32 %v242, %v261
      %v271 = vadd.f32 %v194, %v263
      %v272 = vadd.f32 %v194, %v264
      %v273 = vadd.f32 %v199, %v265
      %v274 = vadd.f32 %v199, %v266
      %v275 = vadd.f32 %v204, %v267
      %v276 = vadd.f32 %v204, %v268
      %v277 = vadd.f32 %v209, %v269
      %v278 = vadd.f32 %v209, %v270
      %s279 = scalar_lea.vmem %s1, 8
      %v280 = vld [vmem:[%s279] sm:$0x3]
      %v281 = vld [vmem:[%s279 + $0x2] sm:$0x3]
      %v282 = vld [vmem:[%s279 + $0x4] sm:$0x3]
      %v283 = vld [vmem:[%s279 + $0x6] sm:$0x3]
      %v284 = vperm.slane %v183, 1
      %v285 = vperm.slane %v183, 3
      %v286 = vperm.slane %v184, 1
      %v287 = vperm.slane %v184, 3
      %v288 = vperm.slane %v185, 1
      %v289 = vperm.slane %v185, 3
      %v290 = vperm.slane %v186, 1
      %v291 = vperm.slane %v186, 3
      %v300 = vperm.slane %v284, 1
      %v301 = vperm.slane %v285, 1
      %v302 = vperm.slane %v286, 1
      %v303 = vperm.slane %v287, 1
      %v304 = vperm.slane %v288, 1
      %v305 = vperm.slane %v289, 1
      %v306 = vperm.slane %v290, 1
      %v307 = vperm.slane %v291, 1
      %309 = vset.pattern.permute.xlu0 0
      %310 = vperm.xlu0 %309, %v280
      %v311 = vpop.permute.xlu0 %310
      %314 = vset.pattern.permute.xlu0 0
      %315 = vperm.xlu0 %314, %v281
      %v316 = vpop.permute.xlu0 %315
      %319 = vset.pattern.permute.xlu0 0
      %320 = vperm.xlu0 %319, %v282
      %v321 = vpop.permute.xlu0 %320
      %324 = vset.pattern.permute.xlu0 0
      %325 = vperm.xlu0 %324, %v283
      %v326 = vpop.permute.xlu0 %325
      %v328 = vmul.f32 %v300, %v311
      %v329 = vmul.f32 %v301, %v311
      %v330 = vmul.f32 %v302, %v316
      %v331 = vmul.f32 %v303, %v316
      %v332 = vmul.f32 %v304, %v321
      %v333 = vmul.f32 %v305, %v321
      %v334 = vmul.f32 %v306, %v326
      %v335 = vmul.f32 %v307, %v326
      %v336 = vadd.f32 %v328, 0.0
      %v337 = vadd.f32 %v329, 0.0
      %v338 = vadd.f32 %v330, 0.0
      %v339 = vadd.f32 %v331, 0.0
      %v340 = vadd.f32 %v332, 0.0
      %v341 = vadd.f32 %v333, 0.0
      %v342 = vadd.f32 %v334, 0.0
      %v343 = vadd.f32 %v335, 0.0
      %s344 = scalar_lea.vmem %s1, 16
      %v345 = vld [vmem:[%s344] sm:$0x3]
      %v346 = vld [vmem:[%s344 + $0x2] sm:$0x3]
      %v347 = vld [vmem:[%s344 + $0x4] sm:$0x3]
      %v348 = vld [vmem:[%s344 + $0x6] sm:$0x3]
      %v349 = vperm.slane %v183, 4
      %v350 = vperm.slane %v184, 4
      %v351 = vperm.slane %v185, 4
      %v352 = vperm.slane %v186, 4
      %v357 = vperm.slane %v349, 0
      %v358 = vperm.slane %v350, 0
      %v359 = vperm.slane %v351, 0
      %v360 = vperm.slane %v352, 0
      %362 = vset.pattern.permute.xlu0 0
      %363 = vperm.xlu0 %362, %v345
      %v364 = vpop.permute.xlu0 %363
      %367 = vset.pattern.permute.xlu0 0
      %368 = vperm.xlu0 %367, %v346
      %v369 = vpop.permute.xlu0 %368
      %372 = vset.pattern.permute.xlu0 0
      %373 = vperm.xlu0 %372, %v347
      %v374 = vpop.permute.xlu0 %373
      %377 = vset.pattern.permute.xlu0 0
      %378 = vperm.xlu0 %377, %v348
      %v379 = vpop.permute.xlu0 %378
      %v381 = vmul.f32 %v235, %v364
      %v382 = vmul.f32 %v236, %v364
      %v383 = vmul.f32 %v357, %v364
      %v384 = vmul.f32 %v237, %v369
      %v385 = vmul.f32 %v238, %v369
      %v386 = vmul.f32 %v358, %v369
      %v387 = vmul.f32 %v239, %v374
      %v388 = vmul.f32 %v240, %v374
      %v389 = vmul.f32 %v359, %v374
      %v390 = vmul.f32 %v241, %v379
      %v391 = vmul.f32 %v242, %v379
      %v392 = vmul.f32 %v360, %v379
      %405 = vrot.lane.b32.xlu0 %v381, 127
      %v406 = vpop.permute.xlu0 %405
      %407 = vrot.lane.b32.xlu0 %v382, 127
      %v408 = vpop.permute.xlu0 %407
      %409 = vrot.lane.b32.xlu0 %v383, 127
      %v410 = vpop.permute.xlu0 %409
      %411 = vrot.lane.b32.xlu0 %v384, 127
      %v412 = vpop.permute.xlu0 %411
      %413 = vrot.lane.b32.xlu0 %v385, 127
      %v414 = vpop.permute.xlu0 %413
      %415 = vrot.lane.b32.xlu0 %v386, 127
      %v416 = vpop.permute.xlu0 %415
      %417 = vrot.lane.b32.xlu0 %v387, 127
      %v418 = vpop.permute.xlu0 %417
      %419 = vrot.lane.b32.xlu0 %v388, 127
      %v420 = vpop.permute.xlu0 %419
      %421 = vrot.lane.b32.xlu0 %v389, 127
      %v422 = vpop.permute.xlu0 %421
      %423 = vrot.lane.b32.xlu0 %v390, 127
      %v424 = vpop.permute.xlu0 %423
      %425 = vrot.lane.b32.xlu0 %v391, 127
      %v426 = vpop.permute.xlu0 %425
      %427 = vrot.lane.b32.xlu0 %v392, 127
      %v428 = vpop.permute.xlu0 %427
      %vm429 = vcmask 1039360
      %v430 = vsel %vm429, %v406, %v408
      %v431 = vsel %vm429, %v408, %v410
      %v432 = vsel %vm429, %v412, %v414
      %v433 = vsel %vm429, %v414, %v416
      %v434 = vsel %vm429, %v418, %v420
      %v435 = vsel %vm429, %v420, %v422
      %v436 = vsel %vm429, %v424, %v426
      %v437 = vsel %vm429, %v426, %v428
      %v446 = vadd.f32 %v271, %v430
      %v447 = vadd.f32 %v272, %v431
      %v448 = vadd.f32 %v273, %v432
      %v449 = vadd.f32 %v274, %v433
      %v450 = vadd.f32 %v275, %v434
      %v451 = vadd.f32 %v276, %v435
      %v452 = vadd.f32 %v277, %v436
      %v453 = vadd.f32 %v278, %v437
      %s454 = scalar_lea.vmem %s1, 24
      %v455 = vld [vmem:[%s454] sm:$0x3]
      %v456 = vld [vmem:[%s454 + $0x2] sm:$0x3]
      %v457 = vld [vmem:[%s454 + $0x4] sm:$0x3]
      %v458 = vld [vmem:[%s454 + $0x6] sm:$0x3]
      %v459 = vperm.slane %v183, 5
      %v460 = vperm.slane %v184, 5
      %v461 = vperm.slane %v185, 5
      %v462 = vperm.slane %v186, 5
      %v467 = vperm.slane %v459, 1
      %v468 = vperm.slane %v460, 1
      %v469 = vperm.slane %v461, 1
      %v470 = vperm.slane %v462, 1
      %472 = vset.pattern.permute.xlu0 0
      %473 = vperm.xlu0 %472, %v455
      %v474 = vpop.permute.xlu0 %473
      %477 = vset.pattern.permute.xlu0 0
      %478 = vperm.xlu0 %477, %v456
      %v479 = vpop.permute.xlu0 %478
      %482 = vset.pattern.permute.xlu0 0
      %483 = vperm.xlu0 %482, %v457
      %v484 = vpop.permute.xlu0 %483
      %487 = vset.pattern.permute.xlu0 0
      %488 = vperm.xlu0 %487, %v458
      %v489 = vpop.permute.xlu0 %488
      %v491 = vmul.f32 %v300, %v474
      %v492 = vmul.f32 %v301, %v474
      %v493 = vmul.f32 %v467, %v474
      %v494 = vmul.f32 %v302, %v479
      %v495 = vmul.f32 %v303, %v479
      %v496 = vmul.f32 %v468, %v479
      %v497 = vmul.f32 %v304, %v484
      %v498 = vmul.f32 %v305, %v484
      %v499 = vmul.f32 %v469, %v484
      %v500 = vmul.f32 %v306, %v489
      %v501 = vmul.f32 %v307, %v489
      %v502 = vmul.f32 %v470, %v489
      %515 = vrot.lane.b32.xlu0 %v491, 127
      %v516 = vpop.permute.xlu0 %515
      %517 = vrot.lane.b32.xlu0 %v492, 127
      %v518 = vpop.permute.xlu0 %517
      %519 = vrot.lane.b32.xlu0 %v493, 127
      %v520 = vpop.permute.xlu0 %519
      %521 = vrot.lane.b32.xlu0 %v494, 127
      %v522 = vpop.permute.xlu0 %521
      %523 = vrot.lane.b32.xlu0 %v495, 127
      %v524 = vpop.permute.xlu0 %523
      %525 = vrot.lane.b32.xlu0 %v496, 127
      %v526 = vpop.permute.xlu0 %525
      %527 = vrot.lane.b32.xlu0 %v497, 127
      %v528 = vpop.permute.xlu0 %527
      %529 = vrot.lane.b32.xlu0 %v498, 127
      %v530 = vpop.permute.xlu0 %529
      %531 = vrot.lane.b32.xlu0 %v499, 127
      %v532 = vpop.permute.xlu0 %531
      %533 = vrot.lane.b32.xlu0 %v500, 127
      %v534 = vpop.permute.xlu0 %533
      %535 = vrot.lane.b32.xlu0 %v501, 127
      %v536 = vpop.permute.xlu0 %535
      %537 = vrot.lane.b32.xlu0 %v502, 127
      %v538 = vpop.permute.xlu0 %537
      %v539 = vsel %vm429, %v516, %v518
      %v540 = vsel %vm429, %v518, %v520
      %v541 = vsel %vm429, %v522, %v524
      %v542 = vsel %vm429, %v524, %v526
      %v543 = vsel %vm429, %v528, %v530
      %v544 = vsel %vm429, %v530, %v532
      %v545 = vsel %vm429, %v534, %v536
      %v546 = vsel %vm429, %v536, %v538
      %v555 = vadd.f32 %v336, %v539
      %v556 = vadd.f32 %v337, %v540
      %v557 = vadd.f32 %v338, %v541
      %v558 = vadd.f32 %v339, %v542
      %v559 = vadd.f32 %v340, %v543
      %v560 = vadd.f32 %v341, %v544
      %v561 = vadd.f32 %v342, %v545
      %v562 = vadd.f32 %v343, %v546
      %s563 = scalar_lea.vmem %s1, 32
      %v564 = vld [vmem:[%s563] sm:$0x3]
      %v565 = vld [vmem:[%s563 + $0x2] sm:$0x3]
      %v566 = vld [vmem:[%s563 + $0x4] sm:$0x3]
      %v567 = vld [vmem:[%s563 + $0x6] sm:$0x3]
      %569 = vset.pattern.permute.xlu0 0
      %570 = vperm.xlu0 %569, %v564
      %v571 = vpop.permute.xlu0 %570
      %574 = vset.pattern.permute.xlu0 0
      %575 = vperm.xlu0 %574, %v565
      %v576 = vpop.permute.xlu0 %575
      %579 = vset.pattern.permute.xlu0 0
      %580 = vperm.xlu0 %579, %v566
      %v581 = vpop.permute.xlu0 %580
      %584 = vset.pattern.permute.xlu0 0
      %585 = vperm.xlu0 %584, %v567
      %v586 = vpop.permute.xlu0 %585
      %v588 = vmul.f32 %v235, %v571
      %v589 = vmul.f32 %v236, %v571
      %v590 = vmul.f32 %v357, %v571
      %v591 = vmul.f32 %v237, %v576
      %v592 = vmul.f32 %v238, %v576
      %v593 = vmul.f32 %v358, %v576
      %v594 = vmul.f32 %v239, %v581
      %v595 = vmul.f32 %v240, %v581
      %v596 = vmul.f32 %v359, %v581
      %v597 = vmul.f32 %v241, %v586
      %v598 = vmul.f32 %v242, %v586
      %v599 = vmul.f32 %v360, %v586
      %612 = vrot.lane.b32.xlu0 %v588, 126
      %v613 = vpop.permute.xlu0 %612
      %614 = vrot.lane.b32.xlu0 %v589, 126
      %v615 = vpop.permute.xlu0 %614
      %616 = vrot.lane.b32.xlu0 %v590, 126
      %v617 = vpop.permute.xlu0 %616
      %618 = vrot.lane.b32.xlu0 %v591, 126
      %v619 = vpop.permute.xlu0 %618
      %620 = vrot.lane.b32.xlu0 %v592, 126
      %v621 = vpop.permute.xlu0 %620
      %622 = vrot.lane.b32.xlu0 %v593, 126
      %v623 = vpop.permute.xlu0 %622
      %624 = vrot.lane.b32.xlu0 %v594, 126
      %v625 = vpop.permute.xlu0 %624
      %626 = vrot.lane.b32.xlu0 %v595, 126
      %v627 = vpop.permute.xlu0 %626
      %628 = vrot.lane.b32.xlu0 %v596, 126
      %v629 = vpop.permute.xlu0 %628
      %630 = vrot.lane.b32.xlu0 %v597, 126
      %v631 = vpop.permute.xlu0 %630
      %632 = vrot.lane.b32.xlu0 %v598, 126
      %v633 = vpop.permute.xlu0 %632
      %634 = vrot.lane.b32.xlu0 %v599, 126
      %v635 = vpop.permute.xlu0 %634
      %vm636 = vcmask 1031168
      %v637 = vsel %vm636, %v613, %v615
      %v638 = vsel %vm636, %v615, %v617
      %v639 = vsel %vm636, %v619, %v621
      %v640 = vsel %vm636, %v621, %v623
      %v641 = vsel %vm636, %v625, %v627
      %v642 = vsel %vm636, %v627, %v629
      %v643 = vsel %vm636, %v631, %v633
      %v644 = vsel %vm636, %v633, %v635
      %v653 = vadd.f32 %v446, %v637
      %v654 = vadd.f32 %v447, %v638
      %v655 = vadd.f32 %v448, %v639
      %v656 = vadd.f32 %v449, %v640
      %v657 = vadd.f32 %v450, %v641
      %v658 = vadd.f32 %v451, %v642
      %v659 = vadd.f32 %v452, %v643
      %v660 = vadd.f32 %v453, %v644
      %s661 = scalar_lea.vmem %s1, 40
      %v662 = vld [vmem:[%s661] sm:$0x3]
      %v663 = vld [vmem:[%s661 + $0x2] sm:$0x3]
      %v664 = vld [vmem:[%s661 + $0x4] sm:$0x3]
      %v665 = vld [vmem:[%s661 + $0x6] sm:$0x3]
      %667 = vset.pattern.permute.xlu0 0
      %668 = vperm.xlu0 %667, %v662
      %v669 = vpop.permute.xlu0 %668
      %672 = vset.pattern.permute.xlu0 0
      %673 = vperm.xlu0 %672, %v663
      %v674 = vpop.permute.xlu0 %673
      %677 = vset.pattern.permute.xlu0 0
      %678 = vperm.xlu0 %677, %v664
      %v679 = vpop.permute.xlu0 %678
      %682 = vset.pattern.permute.xlu0 0
      %683 = vperm.xlu0 %682, %v665
      %v684 = vpop.permute.xlu0 %683
      %v686 = vmul.f32 %v300, %v669
      %v687 = vmul.f32 %v301, %v669
      %v688 = vmul.f32 %v467, %v669
      %v689 = vmul.f32 %v302, %v674
      %v690 = vmul.f32 %v303, %v674
      %v691 = vmul.f32 %v468, %v674
      %v692 = vmul.f32 %v304, %v679
      %v693 = vmul.f32 %v305, %v679
      %v694 = vmul.f32 %v469, %v679
      %v695 = vmul.f32 %v306, %v684
      %v696 = vmul.f32 %v307, %v684
      %v697 = vmul.f32 %v470, %v684
      %710 = vrot.lane.b32.xlu0 %v686, 126
      %v711 = vpop.permute.xlu0 %710
      %712 = vrot.lane.b32.xlu0 %v687, 126
      %v713 = vpop.permute.xlu0 %712
      %714 = vrot.lane.b32.xlu0 %v688, 126
      %v715 = vpop.permute.xlu0 %714
      %716 = vrot.lane.b32.xlu0 %v689, 126
      %v717 = vpop.permute.xlu0 %716
      %718 = vrot.lane.b32.xlu0 %v690, 126
      %v719 = vpop.permute.xlu0 %718
      %720 = vrot.lane.b32.xlu0 %v691, 126
      %v721 = vpop.permute.xlu0 %720
      %722 = vrot.lane.b32.xlu0 %v692, 126
      %v723 = vpop.permute.xlu0 %722
      %724 = vrot.lane.b32.xlu0 %v693, 126
      %v725 = vpop.permute.xlu0 %724
      %726 = vrot.lane.b32.xlu0 %v694, 126
      %v727 = vpop.permute.xlu0 %726
      %728 = vrot.lane.b32.xlu0 %v695, 126
      %v729 = vpop.permute.xlu0 %728
      %730 = vrot.lane.b32.xlu0 %v696, 126
      %v731 = vpop.permute.xlu0 %730
      %732 = vrot.lane.b32.xlu0 %v697, 126
      %v733 = vpop.permute.xlu0 %732
      %v734 = vsel %vm636, %v711, %v713
      %v735 = vsel %vm636, %v713, %v715
      %v736 = vsel %vm636, %v717, %v719
      %v737 = vsel %vm636, %v719, %v721
      %v738 = vsel %vm636, %v723, %v725
      %v739 = vsel %vm636, %v725, %v727
      %v740 = vsel %vm636, %v729, %v731
      %v741 = vsel %vm636, %v731, %v733
      %v750 = vadd.f32 %v555, %v734
      %v751 = vadd.f32 %v556, %v735
      %v752 = vadd.f32 %v557, %v736
      %v753 = vadd.f32 %v558, %v737
      %v754 = vadd.f32 %v559, %v738
      %v755 = vadd.f32 %v560, %v739
      %v756 = vadd.f32 %v561, %v740
      %v757 = vadd.f32 %v562, %v741
      %s758 = scalar_lea.vmem %s1, 48
      %v759 = vld [vmem:[%s758] sm:$0x3]
      %v760 = vld [vmem:[%s758 + $0x2] sm:$0x3]
      %v761 = vld [vmem:[%s758 + $0x4] sm:$0x3]
      %v762 = vld [vmem:[%s758 + $0x6] sm:$0x3]
      %764 = vset.pattern.permute.xlu0 0
      %765 = vperm.xlu0 %764, %v759
      %v766 = vpop.permute.xlu0 %765
      %769 = vset.pattern.permute.xlu0 0
      %770 = vperm.xlu0 %769, %v760
      %v771 = vpop.permute.xlu0 %770
      %774 = vset.pattern.permute.xlu0 0
      %775 = vperm.xlu0 %774, %v761
      %v776 = vpop.permute.xlu0 %775
      %779 = vset.pattern.permute.xlu0 0
      %780 = vperm.xlu0 %779, %v762
      %v781 = vpop.permute.xlu0 %780
      %v783 = vmul.f32 %v235, %v766
      %v784 = vmul.f32 %v236, %v766
      %v785 = vmul.f32 %v357, %v766
      %v786 = vmul.f32 %v237, %v771
      %v787 = vmul.f32 %v238, %v771
      %v788 = vmul.f32 %v358, %v771
      %v789 = vmul.f32 %v239, %v776
      %v790 = vmul.f32 %v240, %v776
      %v791 = vmul.f32 %v359, %v776
      %v792 = vmul.f32 %v241, %v781
      %v793 = vmul.f32 %v242, %v781
      %v794 = vmul.f32 %v360, %v781
      %807 = vrot.lane.b32.xlu0 %v783, 112
      %v808 = vpop.permute.xlu0 %807
      %809 = vrot.lane.b32.xlu0 %v784, 112
      %v810 = vpop.permute.xlu0 %809
      %811 = vrot.lane.b32.xlu0 %v785, 112
      %v812 = vpop.permute.xlu0 %811
      %813 = vrot.lane.b32.xlu0 %v786, 112
      %v814 = vpop.permute.xlu0 %813
      %815 = vrot.lane.b32.xlu0 %v787, 112
      %v816 = vpop.permute.xlu0 %815
      %817 = vrot.lane.b32.xlu0 %v788, 112
      %v818 = vpop.permute.xlu0 %817
      %819 = vrot.lane.b32.xlu0 %v789, 112
      %v820 = vpop.permute.xlu0 %819
      %821 = vrot.lane.b32.xlu0 %v790, 112
      %v822 = vpop.permute.xlu0 %821
      %823 = vrot.lane.b32.xlu0 %v791, 112
      %v824 = vpop.permute.xlu0 %823
      %825 = vrot.lane.b32.xlu0 %v792, 112
      %v826 = vpop.permute.xlu0 %825
      %827 = vrot.lane.b32.xlu0 %v793, 112
      %v828 = vpop.permute.xlu0 %827
      %829 = vrot.lane.b32.xlu0 %v794, 112
      %v830 = vpop.permute.xlu0 %829
      %vm831 = vcmask 916480
      %v832 = vsel %vm831, %v808, %v810
      %v833 = vsel %vm831, %v810, %v812
      %v834 = vsel %vm831, %v814, %v816
      %v835 = vsel %vm831, %v816, %v818
      %v836 = vsel %vm831, %v820, %v822
      %v837 = vsel %vm831, %v822, %v824
      %v838 = vsel %vm831, %v826, %v828
      %v839 = vsel %vm831, %v828, %v830
      %v848 = vadd.f32 %v653, %v832
      %v849 = vadd.f32 %v654, %v833
      %v850 = vadd.f32 %v655, %v834
      %v851 = vadd.f32 %v656, %v835
      %v852 = vadd.f32 %v657, %v836
      %v853 = vadd.f32 %v658, %v837
      %v854 = vadd.f32 %v659, %v838
      %v855 = vadd.f32 %v660, %v839
      %s856 = scalar_lea.vmem %s1, 56
      %v857 = vld [vmem:[%s856] sm:$0x3]
      %v858 = vld [vmem:[%s856 + $0x2] sm:$0x3]
      %v859 = vld [vmem:[%s856 + $0x4] sm:$0x3]
      %v860 = vld [vmem:[%s856 + $0x6] sm:$0x3]
      %862 = vset.pattern.permute.xlu0 0
      %863 = vperm.xlu0 %862, %v857
      %v864 = vpop.permute.xlu0 %863
      %867 = vset.pattern.permute.xlu0 0
      %868 = vperm.xlu0 %867, %v858
      %v869 = vpop.permute.xlu0 %868
      %872 = vset.pattern.permute.xlu0 0
      %873 = vperm.xlu0 %872, %v859
      %v874 = vpop.permute.xlu0 %873
      %877 = vset.pattern.permute.xlu0 0
      %878 = vperm.xlu0 %877, %v860
      %v879 = vpop.permute.xlu0 %878
      %v881 = vmul.f32 %v300, %v864
      %v882 = vmul.f32 %v301, %v864
      %v883 = vmul.f32 %v467, %v864
      %v884 = vmul.f32 %v302, %v869
      %v885 = vmul.f32 %v303, %v869
      %v886 = vmul.f32 %v468, %v869
      %v887 = vmul.f32 %v304, %v874
      %v888 = vmul.f32 %v305, %v874
      %v889 = vmul.f32 %v469, %v874
      %v890 = vmul.f32 %v306, %v879
      %v891 = vmul.f32 %v307, %v879
      %v892 = vmul.f32 %v470, %v879
      %905 = vrot.lane.b32.xlu0 %v881, 112
      %v906 = vpop.permute.xlu0 %905
      %907 = vrot.lane.b32.xlu0 %v882, 112
      %v908 = vpop.permute.xlu0 %907
      %909 = vrot.lane.b32.xlu0 %v883, 112
      %v910 = vpop.permute.xlu0 %909
      %911 = vrot.lane.b32.xlu0 %v884, 112
      %v912 = vpop.permute.xlu0 %911
      %913 = vrot.lane.b32.xlu0 %v885, 112
      %v914 = vpop.permute.xlu0 %913
      %915 = vrot.lane.b32.xlu0 %v886, 112
      %v916 = vpop.permute.xlu0 %915
      %917 = vrot.lane.b32.xlu0 %v887, 112
      %v918 = vpop.permute.xlu0 %917
      %919 = vrot.lane.b32.xlu0 %v888, 112
      %v920 = vpop.permute.xlu0 %919
      %921 = vrot.lane.b32.xlu0 %v889, 112
      %v922 = vpop.permute.xlu0 %921
      %923 = vrot.lane.b32.xlu0 %v890, 112
      %v924 = vpop.permute.xlu0 %923
      %925 = vrot.lane.b32.xlu0 %v891, 112
      %v926 = vpop.permute.xlu0 %925
      %927 = vrot.lane.b32.xlu0 %v892, 112
      %v928 = vpop.permute.xlu0 %927
      %v929 = vsel %vm831, %v906, %v908
      %v930 = vsel %vm831, %v908, %v910
      %v931 = vsel %vm831, %v912, %v914
      %v932 = vsel %vm831, %v914, %v916
      %v933 = vsel %vm831, %v918, %v920
      %v934 = vsel %vm831, %v920, %v922
      %v935 = vsel %vm831, %v924, %v926
      %v936 = vsel %vm831, %v926, %v928
      %v945 = vadd.f32 %v750, %v929
      %v946 = vadd.f32 %v751, %v930
      %v947 = vadd.f32 %v752, %v931
      %v948 = vadd.f32 %v753, %v932
      %v949 = vadd.f32 %v754, %v933
      %v950 = vadd.f32 %v755, %v934
      %v951 = vadd.f32 %v756, %v935
      %v952 = vadd.f32 %v757, %v936
      %s953 = scalar_lea.vmem %s1, 64
      %v954 = vld [vmem:[%s953] sm:$0x3]
      %v955 = vld [vmem:[%s953 + $0x2] sm:$0x3]
      %v956 = vld [vmem:[%s953 + $0x4] sm:$0x3]
      %v957 = vld [vmem:[%s953 + $0x6] sm:$0x3]
      %959 = vset.pattern.permute.xlu0 0
      %960 = vperm.xlu0 %959, %v954
      %v961 = vpop.permute.xlu0 %960
      %964 = vset.pattern.permute.xlu0 0
      %965 = vperm.xlu0 %964, %v955
      %v966 = vpop.permute.xlu0 %965
      %969 = vset.pattern.permute.xlu0 0
      %970 = vperm.xlu0 %969, %v956
      %v971 = vpop.permute.xlu0 %970
      %974 = vset.pattern.permute.xlu0 0
      %975 = vperm.xlu0 %974, %v957
      %v976 = vpop.permute.xlu0 %975
      %v978 = vmul.f32 %v235, %v961
      %v979 = vmul.f32 %v236, %v961
      %v980 = vmul.f32 %v357, %v961
      %v981 = vmul.f32 %v237, %v966
      %v982 = vmul.f32 %v238, %v966
      %v983 = vmul.f32 %v358, %v966
      %v984 = vmul.f32 %v239, %v971
      %v985 = vmul.f32 %v240, %v971
      %v986 = vmul.f32 %v359, %v971
      %v987 = vmul.f32 %v241, %v976
      %v988 = vmul.f32 %v242, %v976
      %v989 = vmul.f32 %v360, %v976
      %1002 = vrot.lane.b32.xlu0 %v978, 111
      %v1003 = vpop.permute.xlu0 %1002
      %1004 = vrot.lane.b32.xlu0 %v979, 111
      %v1005 = vpop.permute.xlu0 %1004
      %1006 = vrot.lane.b32.xlu0 %v980, 111
      %v1007 = vpop.permute.xlu0 %1006
      %1008 = vrot.lane.b32.xlu0 %v981, 111
      %v1009 = vpop.permute.xlu0 %1008
      %1010 = vrot.lane.b32.xlu0 %v982, 111
      %v1011 = vpop.permute.xlu0 %1010
      %1012 = vrot.lane.b32.xlu0 %v983, 111
      %v1013 = vpop.permute.xlu0 %1012
      %1014 = vrot.lane.b32.xlu0 %v984, 111
      %v1015 = vpop.permute.xlu0 %1014
      %1016 = vrot.lane.b32.xlu0 %v985, 111
      %v1017 = vpop.permute.xlu0 %1016
      %1018 = vrot.lane.b32.xlu0 %v986, 111
      %v1019 = vpop.permute.xlu0 %1018
      %1020 = vrot.lane.b32.xlu0 %v987, 111
      %v1021 = vpop.permute.xlu0 %1020
      %1022 = vrot.lane.b32.xlu0 %v988, 111
      %v1023 = vpop.permute.xlu0 %1022
      %1024 = vrot.lane.b32.xlu0 %v989, 111
      %v1025 = vpop.permute.xlu0 %1024
      %vm1026 = vcmask 908288
      %v1027 = vsel %vm1026, %v1003, %v1005
      %v1028 = vsel %vm1026, %v1005, %v1007
      %v1029 = vsel %vm1026, %v1009, %v1011
      %v1030 = vsel %vm1026, %v1011, %v1013
      %v1031 = vsel %vm1026, %v1015, %v1017
      %v1032 = vsel %vm1026, %v1017, %v1019
      %v1033 = vsel %vm1026, %v1021, %v1023
      %v1034 = vsel %vm1026, %v1023, %v1025
      %v1043 = vadd.f32 %v848, %v1027
      %v1044 = vadd.f32 %v849, %v1028
      %v1045 = vadd.f32 %v850, %v1029
      %v1046 = vadd.f32 %v851, %v1030
      %v1047 = vadd.f32 %v852, %v1031
      %v1048 = vadd.f32 %v853, %v1032
      %v1049 = vadd.f32 %v854, %v1033
      %v1050 = vadd.f32 %v855, %v1034
      %s1051 = scalar_lea.vmem %s1, 72
      %v1052 = vld [vmem:[%s1051] sm:$0x3]
      %v1053 = vld [vmem:[%s1051 + $0x2] sm:$0x3]
      %v1054 = vld [vmem:[%s1051 + $0x4] sm:$0x3]
      %v1055 = vld [vmem:[%s1051 + $0x6] sm:$0x3]
      %1057 = vset.pattern.permute.xlu0 0
      %1058 = vperm.xlu0 %1057, %v1052
      %v1059 = vpop.permute.xlu0 %1058
      %1062 = vset.pattern.permute.xlu0 0
      %1063 = vperm.xlu0 %1062, %v1053
      %v1064 = vpop.permute.xlu0 %1063
      %1067 = vset.pattern.permute.xlu0 0
      %1068 = vperm.xlu0 %1067, %v1054
      %v1069 = vpop.permute.xlu0 %1068
      %1072 = vset.pattern.permute.xlu0 0
      %1073 = vperm.xlu0 %1072, %v1055
      %v1074 = vpop.permute.xlu0 %1073
      %v1076 = vmul.f32 %v300, %v1059
      %v1077 = vmul.f32 %v301, %v1059
      %v1078 = vmul.f32 %v467, %v1059
      %v1079 = vmul.f32 %v302, %v1064
      %v1080 = vmul.f32 %v303, %v1064
      %v1081 = vmul.f32 %v468, %v1064
      %v1082 = vmul.f32 %v304, %v1069
      %v1083 = vmul.f32 %v305, %v1069
      %v1084 = vmul.f32 %v469, %v1069
      %v1085 = vmul.f32 %v306, %v1074
      %v1086 = vmul.f32 %v307, %v1074
      %v1087 = vmul.f32 %v470, %v1074
      %1100 = vrot.lane.b32.xlu0 %v1076, 111
      %v1101 = vpop.permute.xlu0 %1100
      %1102 = vrot.lane.b32.xlu0 %v1077, 111
      %v1103 = vpop.permute.xlu0 %1102
      %1104 = vrot.lane.b32.xlu0 %v1078, 111
      %v1105 = vpop.permute.xlu0 %1104
      %1106 = vrot.lane.b32.xlu0 %v1079, 111
      %v1107 = vpop.permute.xlu0 %1106
      %1108 = vrot.lane.b32.xlu0 %v1080, 111
      %v1109 = vpop.permute.xlu0 %1108
      %1110 = vrot.lane.b32.xlu0 %v1081, 111
      %v1111 = vpop.permute.xlu0 %1110
      %1112 = vrot.lane.b32.xlu0 %v1082, 111
      %v1113 = vpop.permute.xlu0 %1112
      %1114 = vrot.lane.b32.xlu0 %v1083, 111
      %v1115 = vpop.permute.xlu0 %1114
      %1116 = vrot.lane.b32.xlu0 %v1084, 111
      %v1117 = vpop.permute.xlu0 %1116
      %1118 = vrot.lane.b32.xlu0 %v1085, 111
      %v1119 = vpop.permute.xlu0 %1118
      %1120 = vrot.lane.b32.xlu0 %v1086, 111
      %v1121 = vpop.permute.xlu0 %1120
      %1122 = vrot.lane.b32.xlu0 %v1087, 111
      %v1123 = vpop.permute.xlu0 %1122
      %v1124 = vsel %vm1026, %v1101, %v1103
      %v1125 = vsel %vm1026, %v1103, %v1105
      %v1126 = vsel %vm1026, %v1107, %v1109
      %v1127 = vsel %vm1026, %v1109, %v1111
      %v1128 = vsel %vm1026, %v1113, %v1115
      %v1129 = vsel %vm1026, %v1115, %v1117
      %v1130 = vsel %vm1026, %v1119, %v1121
      %v1131 = vsel %vm1026, %v1121, %v1123
      %v1140 = vadd.f32 %v945, %v1124
      %v1141 = vadd.f32 %v946, %v1125
      %v1142 = vadd.f32 %v947, %v1126
      %v1143 = vadd.f32 %v948, %v1127
      %v1144 = vadd.f32 %v949, %v1128
      %v1145 = vadd.f32 %v950, %v1129
      %v1146 = vadd.f32 %v951, %v1130
      %v1147 = vadd.f32 %v952, %v1131
      %s1148 = scalar_lea.vmem %s1, 80
      %v1149 = vld [vmem:[%s1148] sm:$0x3]
      %v1150 = vld [vmem:[%s1148 + $0x2] sm:$0x3]
      %v1151 = vld [vmem:[%s1148 + $0x4] sm:$0x3]
      %v1152 = vld [vmem:[%s1148 + $0x6] sm:$0x3]
      %1154 = vset.pattern.permute.xlu0 0
      %1155 = vperm.xlu0 %1154, %v1149
      %v1156 = vpop.permute.xlu0 %1155
      %1159 = vset.pattern.permute.xlu0 0
      %1160 = vperm.xlu0 %1159, %v1150
      %v1161 = vpop.permute.xlu0 %1160
      %1164 = vset.pattern.permute.xlu0 0
      %1165 = vperm.xlu0 %1164, %v1151
      %v1166 = vpop.permute.xlu0 %1165
      %1169 = vset.pattern.permute.xlu0 0
      %1170 = vperm.xlu0 %1169, %v1152
      %v1171 = vpop.permute.xlu0 %1170
      %v1173 = vmul.f32 %v235, %v1156
      %v1174 = vmul.f32 %v236, %v1156
      %v1175 = vmul.f32 %v357, %v1156
      %v1176 = vmul.f32 %v237, %v1161
      %v1177 = vmul.f32 %v238, %v1161
      %v1178 = vmul.f32 %v358, %v1161
      %v1179 = vmul.f32 %v239, %v1166
      %v1180 = vmul.f32 %v240, %v1166
      %v1181 = vmul.f32 %v359, %v1166
      %v1182 = vmul.f32 %v241, %v1171
      %v1183 = vmul.f32 %v242, %v1171
      %v1184 = vmul.f32 %v360, %v1171
      %1197 = vrot.lane.b32.xlu0 %v1173, 110
      %v1198 = vpop.permute.xlu0 %1197
      %1199 = vrot.lane.b32.xlu0 %v1174, 110
      %v1200 = vpop.permute.xlu0 %1199
      %1201 = vrot.lane.b32.xlu0 %v1175, 110
      %v1202 = vpop.permute.xlu0 %1201
      %1203 = vrot.lane.b32.xlu0 %v1176, 110
      %v1204 = vpop.permute.xlu0 %1203
      %1205 = vrot.lane.b32.xlu0 %v1177, 110
      %v1206 = vpop.permute.xlu0 %1205
      %1207 = vrot.lane.b32.xlu0 %v1178, 110
      %v1208 = vpop.permute.xlu0 %1207
      %1209 = vrot.lane.b32.xlu0 %v1179, 110
      %v1210 = vpop.permute.xlu0 %1209
      %1211 = vrot.lane.b32.xlu0 %v1180, 110
      %v1212 = vpop.permute.xlu0 %1211
      %1213 = vrot.lane.b32.xlu0 %v1181, 110
      %v1214 = vpop.permute.xlu0 %1213
      %1215 = vrot.lane.b32.xlu0 %v1182, 110
      %v1216 = vpop.permute.xlu0 %1215
      %1217 = vrot.lane.b32.xlu0 %v1183, 110
      %v1218 = vpop.permute.xlu0 %1217
      %1219 = vrot.lane.b32.xlu0 %v1184, 110
      %v1220 = vpop.permute.xlu0 %1219
      %vm1221 = vcmask 900096
      %v1222 = vsel %vm1221, %v1198, %v1200
      %v1223 = vsel %vm1221, %v1200, %v1202
      %v1224 = vsel %vm1221, %v1204, %v1206
      %v1225 = vsel %vm1221, %v1206, %v1208
      %v1226 = vsel %vm1221, %v1210, %v1212
      %v1227 = vsel %vm1221, %v1212, %v1214
      %v1228 = vsel %vm1221, %v1216, %v1218
      %v1229 = vsel %vm1221, %v1218, %v1220
      %v1238 = vadd.f32 %v1043, %v1222
      %v1239 = vadd.f32 %v1044, %v1223
      %v1240 = vadd.f32 %v1045, %v1224
      %v1241 = vadd.f32 %v1046, %v1225
      %v1242 = vadd.f32 %v1047, %v1226
      %v1243 = vadd.f32 %v1048, %v1227
      %v1244 = vadd.f32 %v1049, %v1228
      %v1245 = vadd.f32 %v1050, %v1229
      %s1246 = scalar_lea.vmem %s1, 88
      %v1247 = vld [vmem:[%s1246] sm:$0x3]
      %v1248 = vld [vmem:[%s1246 + $0x2] sm:$0x3]
      %v1249 = vld [vmem:[%s1246 + $0x4] sm:$0x3]
      %v1250 = vld [vmem:[%s1246 + $0x6] sm:$0x3]
      %1252 = vset.pattern.permute.xlu0 0
      %1253 = vperm.xlu0 %1252, %v1247
      %v1254 = vpop.permute.xlu0 %1253
      %1257 = vset.pattern.permute.xlu0 0
      %1258 = vperm.xlu0 %1257, %v1248
      %v1259 = vpop.permute.xlu0 %1258
      %1262 = vset.pattern.permute.xlu0 0
      %1263 = vperm.xlu0 %1262, %v1249
      %v1264 = vpop.permute.xlu0 %1263
      %1267 = vset.pattern.permute.xlu0 0
      %1268 = vperm.xlu0 %1267, %v1250
      %v1269 = vpop.permute.xlu0 %1268
      %v1271 = vmul.f32 %v300, %v1254
      %v1272 = vmul.f32 %v301, %v1254
      %v1273 = vmul.f32 %v467, %v1254
      %v1274 = vmul.f32 %v302, %v1259
      %v1275 = vmul.f32 %v303, %v1259
      %v1276 = vmul.f32 %v468, %v1259
      %v1277 = vmul.f32 %v304, %v1264
      %v1278 = vmul.f32 %v305, %v1264
      %v1279 = vmul.f32 %v469, %v1264
      %v1280 = vmul.f32 %v306, %v1269
      %v1281 = vmul.f32 %v307, %v1269
      %v1282 = vmul.f32 %v470, %v1269
      %1295 = vrot.lane.b32.xlu0 %v1271, 110
      %v1296 = vpop.permute.xlu0 %1295
      %1297 = vrot.lane.b32.xlu0 %v1272, 110
      %v1298 = vpop.permute.xlu0 %1297
      %1299 = vrot.lane.b32.xlu0 %v1273, 110
      %v1300 = vpop.permute.xlu0 %1299
      %1301 = vrot.lane.b32.xlu0 %v1274, 110
      %v1302 = vpop.permute.xlu0 %1301
      %1303 = vrot.lane.b32.xlu0 %v1275, 110
      %v1304 = vpop.permute.xlu0 %1303
      %1305 = vrot.lane.b32.xlu0 %v1276, 110
      %v1306 = vpop.permute.xlu0 %1305
      %1307 = vrot.lane.b32.xlu0 %v1277, 110
      %v1308 = vpop.permute.xlu0 %1307
      %1309 = vrot.lane.b32.xlu0 %v1278, 110
      %v1310 = vpop.permute.xlu0 %1309
      %1311 = vrot.lane.b32.xlu0 %v1279, 110
      %v1312 = vpop.permute.xlu0 %1311
      %1313 = vrot.lane.b32.xlu0 %v1280, 110
      %v1314 = vpop.permute.xlu0 %1313
      %1315 = vrot.lane.b32.xlu0 %v1281, 110
      %v1316 = vpop.permute.xlu0 %1315
      %1317 = vrot.lane.b32.xlu0 %v1282, 110
      %v1318 = vpop.permute.xlu0 %1317
      %v1319 = vsel %vm1221, %v1296, %v1298
      %v1320 = vsel %vm1221, %v1298, %v1300
      %v1321 = vsel %vm1221, %v1302, %v1304
      %v1322 = vsel %vm1221, %v1304, %v1306
      %v1323 = vsel %vm1221, %v1308, %v1310
      %v1324 = vsel %vm1221, %v1310, %v1312
      %v1325 = vsel %vm1221, %v1314, %v1316
      %v1326 = vsel %vm1221, %v1316, %v1318
      %v1335 = vadd.f32 %v1140, %v1319
      %v1336 = vadd.f32 %v1141, %v1320
      %v1337 = vadd.f32 %v1142, %v1321
      %v1338 = vadd.f32 %v1143, %v1322
      %v1339 = vadd.f32 %v1144, %v1323
      %v1340 = vadd.f32 %v1145, %v1324
      %v1341 = vadd.f32 %v1146, %v1325
      %v1342 = vadd.f32 %v1147, %v1326
      %s1343 = scalar_lea.vmem %s1, 96
      %v1344 = vld [vmem:[%s1343] sm:$0x3]
      %v1345 = vld [vmem:[%s1343 + $0x2] sm:$0x3]
      %v1346 = vld [vmem:[%s1343 + $0x4] sm:$0x3]
      %v1347 = vld [vmem:[%s1343 + $0x6] sm:$0x3]
      %1349 = vset.pattern.permute.xlu0 0
      %1350 = vperm.xlu0 %1349, %v1344
      %v1351 = vpop.permute.xlu0 %1350
      %1354 = vset.pattern.permute.xlu0 0
      %1355 = vperm.xlu0 %1354, %v1345
      %v1356 = vpop.permute.xlu0 %1355
      %1359 = vset.pattern.permute.xlu0 0
      %1360 = vperm.xlu0 %1359, %v1346
      %v1361 = vpop.permute.xlu0 %1360
      %1364 = vset.pattern.permute.xlu0 0
      %1365 = vperm.xlu0 %1364, %v1347
      %v1366 = vpop.permute.xlu0 %1365
      %v1368 = vmul.f32 %v235, %v1351
      %v1369 = vmul.f32 %v236, %v1351
      %v1370 = vmul.f32 %v357, %v1351
      %v1371 = vmul.f32 %v237, %v1356
      %v1372 = vmul.f32 %v238, %v1356
      %v1373 = vmul.f32 %v358, %v1356
      %v1374 = vmul.f32 %v239, %v1361
      %v1375 = vmul.f32 %v240, %v1361
      %v1376 = vmul.f32 %v359, %v1361
      %v1377 = vmul.f32 %v241, %v1366
      %v1378 = vmul.f32 %v242, %v1366
      %v1379 = vmul.f32 %v360, %v1366
      %1392 = vrot.lane.b32.xlu0 %v1368, 96
      %v1393 = vpop.permute.xlu0 %1392
      %1394 = vrot.lane.b32.xlu0 %v1369, 96
      %v1395 = vpop.permute.xlu0 %1394
      %1396 = vrot.lane.b32.xlu0 %v1370, 96
      %v1397 = vpop.permute.xlu0 %1396
      %1398 = vrot.lane.b32.xlu0 %v1371, 96
      %v1399 = vpop.permute.xlu0 %1398
      %1400 = vrot.lane.b32.xlu0 %v1372, 96
      %v1401 = vpop.permute.xlu0 %1400
      %1402 = vrot.lane.b32.xlu0 %v1373, 96
      %v1403 = vpop.permute.xlu0 %1402
      %1404 = vrot.lane.b32.xlu0 %v1374, 96
      %v1405 = vpop.permute.xlu0 %1404
      %1406 = vrot.lane.b32.xlu0 %v1375, 96
      %v1407 = vpop.permute.xlu0 %1406
      %1408 = vrot.lane.b32.xlu0 %v1376, 96
      %v1409 = vpop.permute.xlu0 %1408
      %1410 = vrot.lane.b32.xlu0 %v1377, 96
      %v1411 = vpop.permute.xlu0 %1410
      %1412 = vrot.lane.b32.xlu0 %v1378, 96
      %v1413 = vpop.permute.xlu0 %1412
      %1414 = vrot.lane.b32.xlu0 %v1379, 96
      %v1415 = vpop.permute.xlu0 %1414
      %vm1416 = vcmask 785408
      %v1417 = vsel %vm1416, %v1393, %v1395
      %v1418 = vsel %vm1416, %v1395, %v1397
      %v1419 = vsel %vm1416, %v1399, %v1401
      %v1420 = vsel %vm1416, %v1401, %v1403
      %v1421 = vsel %vm1416, %v1405, %v1407
      %v1422 = vsel %vm1416, %v1407, %v1409
      %v1423 = vsel %vm1416, %v1411, %v1413
      %v1424 = vsel %vm1416, %v1413, %v1415
      %v1433 = vadd.f32 %v1238, %v1417
      %v1434 = vadd.f32 %v1239, %v1418
      %v1435 = vadd.f32 %v1240, %v1419
      %v1436 = vadd.f32 %v1241, %v1420
      %v1437 = vadd.f32 %v1242, %v1421
      %v1438 = vadd.f32 %v1243, %v1422
      %v1439 = vadd.f32 %v1244, %v1423
      %v1440 = vadd.f32 %v1245, %v1424
      %s1441 = scalar_lea.vmem %s1, 104
      %v1442 = vld [vmem:[%s1441] sm:$0x3]
      %v1443 = vld [vmem:[%s1441 + $0x2] sm:$0x3]
      %v1444 = vld [vmem:[%s1441 + $0x4] sm:$0x3]
      %v1445 = vld [vmem:[%s1441 + $0x6] sm:$0x3]
      %1447 = vset.pattern.permute.xlu0 0
      %1448 = vperm.xlu0 %1447, %v1442
      %v1449 = vpop.permute.xlu0 %1448
      %1452 = vset.pattern.permute.xlu0 0
      %1453 = vperm.xlu0 %1452, %v1443
      %v1454 = vpop.permute.xlu0 %1453
      %1457 = vset.pattern.permute.xlu0 0
      %1458 = vperm.xlu0 %1457, %v1444
      %v1459 = vpop.permute.xlu0 %1458
      %1462 = vset.pattern.permute.xlu0 0
      %1463 = vperm.xlu0 %1462, %v1445
      %v1464 = vpop.permute.xlu0 %1463
      %v1466 = vmul.f32 %v300, %v1449
      %v1467 = vmul.f32 %v301, %v1449
      %v1468 = vmul.f32 %v467, %v1449
      %v1469 = vmul.f32 %v302, %v1454
      %v1470 = vmul.f32 %v303, %v1454
      %v1471 = vmul.f32 %v468, %v1454
      %v1472 = vmul.f32 %v304, %v1459
      %v1473 = vmul.f32 %v305, %v1459
      %v1474 = vmul.f32 %v469, %v1459
      %v1475 = vmul.f32 %v306, %v1464
      %v1476 = vmul.f32 %v307, %v1464
      %v1477 = vmul.f32 %v470, %v1464
      %1490 = vrot.lane.b32.xlu0 %v1466, 96
      %v1491 = vpop.permute.xlu0 %1490
      %1492 = vrot.lane.b32.xlu0 %v1467, 96
      %v1493 = vpop.permute.xlu0 %1492
      %1494 = vrot.lane.b32.xlu0 %v1468, 96
      %v1495 = vpop.permute.xlu0 %1494
      %1496 = vrot.lane.b32.xlu0 %v1469, 96
      %v1497 = vpop.permute.xlu0 %1496
      %1498 = vrot.lane.b32.xlu0 %v1470, 96
      %v1499 = vpop.permute.xlu0 %1498
      %1500 = vrot.lane.b32.xlu0 %v1471, 96
      %v1501 = vpop.permute.xlu0 %1500
      %1502 = vrot.lane.b32.xlu0 %v1472, 96
      %v1503 = vpop.permute.xlu0 %1502
      %1504 = vrot.lane.b32.xlu0 %v1473, 96
      %v1505 = vpop.permute.xlu0 %1504
      %1506 = vrot.lane.b32.xlu0 %v1474, 96
      %v1507 = vpop.permute.xlu0 %1506
      %1508 = vrot.lane.b32.xlu0 %v1475, 96
      %v1509 = vpop.permute.xlu0 %1508
      %1510 = vrot.lane.b32.xlu0 %v1476, 96
      %v1511 = vpop.permute.xlu0 %1510
      %1512 = vrot.lane.b32.xlu0 %v1477, 96
      %v1513 = vpop.permute.xlu0 %1512
      %v1514 = vsel %vm1416, %v1491, %v1493
      %v1515 = vsel %vm1416, %v1493, %v1495
      %v1516 = vsel %vm1416, %v1497, %v1499
      %v1517 = vsel %vm1416, %v1499, %v1501
      %v1518 = vsel %vm1416, %v1503, %v1505
      %v1519 = vsel %vm1416, %v1505, %v1507
      %v1520 = vsel %vm1416, %v1509, %v1511
      %v1521 = vsel %vm1416, %v1511, %v1513
      %v1530 = vadd.f32 %v1335, %v1514
      %v1531 = vadd.f32 %v1336, %v1515
      %v1532 = vadd.f32 %v1337, %v1516
      %v1533 = vadd.f32 %v1338, %v1517
      %v1534 = vadd.f32 %v1339, %v1518
      %v1535 = vadd.f32 %v1340, %v1519
      %v1536 = vadd.f32 %v1341, %v1520
      %v1537 = vadd.f32 %v1342, %v1521
      %s1538 = scalar_lea.vmem %s1, 112
      %v1539 = vld [vmem:[%s1538] sm:$0x3]
      %v1540 = vld [vmem:[%s1538 + $0x2] sm:$0x3]
      %v1541 = vld [vmem:[%s1538 + $0x4] sm:$0x3]
      %v1542 = vld [vmem:[%s1538 + $0x6] sm:$0x3]
      %1544 = vset.pattern.permute.xlu0 0
      %1545 = vperm.xlu0 %1544, %v1539
      %v1546 = vpop.permute.xlu0 %1545
      %1549 = vset.pattern.permute.xlu0 0
      %1550 = vperm.xlu0 %1549, %v1540
      %v1551 = vpop.permute.xlu0 %1550
      %1554 = vset.pattern.permute.xlu0 0
      %1555 = vperm.xlu0 %1554, %v1541
      %v1556 = vpop.permute.xlu0 %1555
      %1559 = vset.pattern.permute.xlu0 0
      %1560 = vperm.xlu0 %1559, %v1542
      %v1561 = vpop.permute.xlu0 %1560
      %v1563 = vmul.f32 %v235, %v1546
      %v1564 = vmul.f32 %v236, %v1546
      %v1565 = vmul.f32 %v357, %v1546
      %v1566 = vmul.f32 %v237, %v1551
      %v1567 = vmul.f32 %v238, %v1551
      %v1568 = vmul.f32 %v358, %v1551
      %v1569 = vmul.f32 %v239, %v1556
      %v1570 = vmul.f32 %v240, %v1556
      %v1571 = vmul.f32 %v359, %v1556
      %v1572 = vmul.f32 %v241, %v1561
      %v1573 = vmul.f32 %v242, %v1561
      %v1574 = vmul.f32 %v360, %v1561
      %1587 = vrot.lane.b32.xlu0 %v1563, 95
      %v1588 = vpop.permute.xlu0 %1587
      %1589 = vrot.lane.b32.xlu0 %v1564, 95
      %v1590 = vpop.permute.xlu0 %1589
      %1591 = vrot.lane.b32.xlu0 %v1565, 95
      %v1592 = vpop.permute.xlu0 %1591
      %1593 = vrot.lane.b32.xlu0 %v1566, 95
      %v1594 = vpop.permute.xlu0 %1593
      %1595 = vrot.lane.b32.xlu0 %v1567, 95
      %v1596 = vpop.permute.xlu0 %1595
      %1597 = vrot.lane.b32.xlu0 %v1568, 95
      %v1598 = vpop.permute.xlu0 %1597
      %1599 = vrot.lane.b32.xlu0 %v1569, 95
      %v1600 = vpop.permute.xlu0 %1599
      %1601 = vrot.lane.b32.xlu0 %v1570, 95
      %v1602 = vpop.permute.xlu0 %1601
      %1603 = vrot.lane.b32.xlu0 %v1571, 95
      %v1604 = vpop.permute.xlu0 %1603
      %1605 = vrot.lane.b32.xlu0 %v1572, 95
      %v1606 = vpop.permute.xlu0 %1605
      %1607 = vrot.lane.b32.xlu0 %v1573, 95
      %v1608 = vpop.permute.xlu0 %1607
      %1609 = vrot.lane.b32.xlu0 %v1574, 95
      %v1610 = vpop.permute.xlu0 %1609
      %vm1611 = vcmask 777216
      %v1612 = vsel %vm1611, %v1588, %v1590
      %v1613 = vsel %vm1611, %v1590, %v1592
      %v1614 = vsel %vm1611, %v1594, %v1596
      %v1615 = vsel %vm1611, %v1596, %v1598
      %v1616 = vsel %vm1611, %v1600, %v1602
      %v1617 = vsel %vm1611, %v1602, %v1604
      %v1618 = vsel %vm1611, %v1606, %v1608
      %v1619 = vsel %vm1611, %v1608, %v1610
      %v1628 = vadd.f32 %v1433, %v1612
      %v1629 = vadd.f32 %v1434, %v1613
      %v1630 = vadd.f32 %v1435, %v1614
      %v1631 = vadd.f32 %v1436, %v1615
      %v1632 = vadd.f32 %v1437, %v1616
      %v1633 = vadd.f32 %v1438, %v1617
      %v1634 = vadd.f32 %v1439, %v1618
      %v1635 = vadd.f32 %v1440, %v1619
      %s1636 = scalar_lea.vmem %s1, 120
      %v1637 = vld [vmem:[%s1636] sm:$0x3]
      %v1638 = vld [vmem:[%s1636 + $0x2] sm:$0x3]
      %v1639 = vld [vmem:[%s1636 + $0x4] sm:$0x3]
      %v1640 = vld [vmem:[%s1636 + $0x6] sm:$0x3]
      %1642 = vset.pattern.permute.xlu0 0
      %1643 = vperm.xlu0 %1642, %v1637
      %v1644 = vpop.permute.xlu0 %1643
      %1647 = vset.pattern.permute.xlu0 0
      %1648 = vperm.xlu0 %1647, %v1638
      %v1649 = vpop.permute.xlu0 %1648
      %1652 = vset.pattern.permute.xlu0 0
      %1653 = vperm.xlu0 %1652, %v1639
      %v1654 = vpop.permute.xlu0 %1653
      %1657 = vset.pattern.permute.xlu0 0
      %1658 = vperm.xlu0 %1657, %v1640
      %v1659 = vpop.permute.xlu0 %1658
      %v1661 = vmul.f32 %v300, %v1644
      %v1662 = vmul.f32 %v301, %v1644
      %v1663 = vmul.f32 %v467, %v1644
      %v1664 = vmul.f32 %v302, %v1649
      %v1665 = vmul.f32 %v303, %v1649
      %v1666 = vmul.f32 %v468, %v1649
      %v1667 = vmul.f32 %v304, %v1654
      %v1668 = vmul.f32 %v305, %v1654
      %v1669 = vmul.f32 %v469, %v1654
      %v1670 = vmul.f32 %v306, %v1659
      %v1671 = vmul.f32 %v307, %v1659
      %v1672 = vmul.f32 %v470, %v1659
      %1685 = vrot.lane.b32.xlu0 %v1661, 95
      %v1686 = vpop.permute.xlu0 %1685
      %1687 = vrot.lane.b32.xlu0 %v1662, 95
      %v1688 = vpop.permute.xlu0 %1687
      %1689 = vrot.lane.b32.xlu0 %v1663, 95
      %v1690 = vpop.permute.xlu0 %1689
      %1691 = vrot.lane.b32.xlu0 %v1664, 95
      %v1692 = vpop.permute.xlu0 %1691
      %1693 = vrot.lane.b32.xlu0 %v1665, 95
      %v1694 = vpop.permute.xlu0 %1693
      %1695 = vrot.lane.b32.xlu0 %v1666, 95
      %v1696 = vpop.permute.xlu0 %1695
      %1697 = vrot.lane.b32.xlu0 %v1667, 95
      %v1698 = vpop.permute.xlu0 %1697
      %1699 = vrot.lane.b32.xlu0 %v1668, 95
      %v1700 = vpop.permute.xlu0 %1699
      %1701 = vrot.lane.b32.xlu0 %v1669, 95
      %v1702 = vpop.permute.xlu0 %1701
      %1703 = vrot.lane.b32.xlu0 %v1670, 95
      %v1704 = vpop.permute.xlu0 %1703
      %1705 = vrot.lane.b32.xlu0 %v1671, 95
      %v1706 = vpop.permute.xlu0 %1705
      %1707 = vrot.lane.b32.xlu0 %v1672, 95
      %v1708 = vpop.permute.xlu0 %1707
      %v1709 = vsel %vm1611, %v1686, %v1688
      %v1710 = vsel %vm1611, %v1688, %v1690
      %v1711 = vsel %vm1611, %v1692, %v1694
      %v1712 = vsel %vm1611, %v1694, %v1696
      %v1713 = vsel %vm1611, %v1698, %v1700
      %v1714 = vsel %vm1611, %v1700, %v1702
      %v1715 = vsel %vm1611, %v1704, %v1706
      %v1716 = vsel %vm1611, %v1706, %v1708
      %v1725 = vadd.f32 %v1530, %v1709
      %v1726 = vadd.f32 %v1531, %v1710
      %v1727 = vadd.f32 %v1532, %v1711
      %v1728 = vadd.f32 %v1533, %v1712
      %v1729 = vadd.f32 %v1534, %v1713
      %v1730 = vadd.f32 %v1535, %v1714
      %v1731 = vadd.f32 %v1536, %v1715
      %v1732 = vadd.f32 %v1537, %v1716
      %s1733 = scalar_lea.vmem %s1, 128
      %v1734 = vld [vmem:[%s1733] sm:$0x3]
      %v1735 = vld [vmem:[%s1733 + $0x2] sm:$0x3]
      %v1736 = vld [vmem:[%s1733 + $0x4] sm:$0x3]
      %v1737 = vld [vmem:[%s1733 + $0x6] sm:$0x3]
      %1739 = vset.pattern.permute.xlu0 0
      %1740 = vperm.xlu0 %1739, %v1734
      %v1741 = vpop.permute.xlu0 %1740
      %1744 = vset.pattern.permute.xlu0 0
      %1745 = vperm.xlu0 %1744, %v1735
      %v1746 = vpop.permute.xlu0 %1745
      %1749 = vset.pattern.permute.xlu0 0
      %1750 = vperm.xlu0 %1749, %v1736
      %v1751 = vpop.permute.xlu0 %1750
      %1754 = vset.pattern.permute.xlu0 0
      %1755 = vperm.xlu0 %1754, %v1737
      %v1756 = vpop.permute.xlu0 %1755
      %v1758 = vmul.f32 %v235, %v1741
      %v1759 = vmul.f32 %v236, %v1741
      %v1760 = vmul.f32 %v357, %v1741
      %v1761 = vmul.f32 %v237, %v1746
      %v1762 = vmul.f32 %v238, %v1746
      %v1763 = vmul.f32 %v358, %v1746
      %v1764 = vmul.f32 %v239, %v1751
      %v1765 = vmul.f32 %v240, %v1751
      %v1766 = vmul.f32 %v359, %v1751
      %v1767 = vmul.f32 %v241, %v1756
      %v1768 = vmul.f32 %v242, %v1756
      %v1769 = vmul.f32 %v360, %v1756
      %1782 = vrot.lane.b32.xlu0 %v1758, 94
      %v1783 = vpop.permute.xlu0 %1782
      %1784 = vrot.lane.b32.xlu0 %v1759, 94
      %v1785 = vpop.permute.xlu0 %1784
      %1786 = vrot.lane.b32.xlu0 %v1760, 94
      %v1787 = vpop.permute.xlu0 %1786
      %1788 = vrot.lane.b32.xlu0 %v1761, 94
      %v1789 = vpop.permute.xlu0 %1788
      %1790 = vrot.lane.b32.xlu0 %v1762, 94
      %v1791 = vpop.permute.xlu0 %1790
      %1792 = vrot.lane.b32.xlu0 %v1763, 94
      %v1793 = vpop.permute.xlu0 %1792
      %1794 = vrot.lane.b32.xlu0 %v1764, 94
      %v1795 = vpop.permute.xlu0 %1794
      %1796 = vrot.lane.b32.xlu0 %v1765, 94
      %v1797 = vpop.permute.xlu0 %1796
      %1798 = vrot.lane.b32.xlu0 %v1766, 94
      %v1799 = vpop.permute.xlu0 %1798
      %1800 = vrot.lane.b32.xlu0 %v1767, 94
      %v1801 = vpop.permute.xlu0 %1800
      %1802 = vrot.lane.b32.xlu0 %v1768, 94
      %v1803 = vpop.permute.xlu0 %1802
      %1804 = vrot.lane.b32.xlu0 %v1769, 94
      %v1805 = vpop.permute.xlu0 %1804
      %vm1806 = vcmask 769024
      %v1807 = vsel %vm1806, %v1783, %v1785
      %v1808 = vsel %vm1806, %v1785, %v1787
      %v1809 = vsel %vm1806, %v1789, %v1791
      %v1810 = vsel %vm1806, %v1791, %v1793
      %v1811 = vsel %vm1806, %v1795, %v1797
      %v1812 = vsel %vm1806, %v1797, %v1799
      %v1813 = vsel %vm1806, %v1801, %v1803
      %v1814 = vsel %vm1806, %v1803, %v1805
      %v1823 = vadd.f32 %v1628, %v1807
      %v1824 = vadd.f32 %v1629, %v1808
      %v1825 = vadd.f32 %v1630, %v1809
      %v1826 = vadd.f32 %v1631, %v1810
      %v1827 = vadd.f32 %v1632, %v1811
      %v1828 = vadd.f32 %v1633, %v1812
      %v1829 = vadd.f32 %v1634, %v1813
      %v1830 = vadd.f32 %v1635, %v1814
      %s1831 = scalar_lea.vmem %s1, 136
      %v1832 = vld [vmem:[%s1831] sm:$0x3]
      %v1833 = vld [vmem:[%s1831 + $0x2] sm:$0x3]
      %v1834 = vld [vmem:[%s1831 + $0x4] sm:$0x3]
      %v1835 = vld [vmem:[%s1831 + $0x6] sm:$0x3]
      %1837 = vset.pattern.permute.xlu0 0
      %1838 = vperm.xlu0 %1837, %v1832
      %v1839 = vpop.permute.xlu0 %1838
      %1842 = vset.pattern.permute.xlu0 0
      %1843 = vperm.xlu0 %1842, %v1833
      %v1844 = vpop.permute.xlu0 %1843
      %1847 = vset.pattern.permute.xlu0 0
      %1848 = vperm.xlu0 %1847, %v1834
      %v1849 = vpop.permute.xlu0 %1848
      %1852 = vset.pattern.permute.xlu0 0
      %1853 = vperm.xlu0 %1852, %v1835
      %v1854 = vpop.permute.xlu0 %1853
      %v1856 = vmul.f32 %v300, %v1839
      %v1857 = vmul.f32 %v301, %v1839
      %v1858 = vmul.f32 %v467, %v1839
      %v1859 = vmul.f32 %v302, %v1844
      %v1860 = vmul.f32 %v303, %v1844
      %v1861 = vmul.f32 %v468, %v1844
      %v1862 = vmul.f32 %v304, %v1849
      %v1863 = vmul.f32 %v305, %v1849
      %v1864 = vmul.f32 %v469, %v1849
      %v1865 = vmul.f32 %v306, %v1854
      %v1866 = vmul.f32 %v307, %v1854
      %v1867 = vmul.f32 %v470, %v1854
      %1880 = vrot.lane.b32.xlu0 %v1856, 94
      %v1881 = vpop.permute.xlu0 %1880
      %1882 = vrot.lane.b32.xlu0 %v1857, 94
      %v1883 = vpop.permute.xlu0 %1882
      %1884 = vrot.lane.b32.xlu0 %v1858, 94
      %v1885 = vpop.permute.xlu0 %1884
      %1886 = vrot.lane.b32.xlu0 %v1859, 94
      %v1887 = vpop.permute.xlu0 %1886
      %1888 = vrot.lane.b32.xlu0 %v1860, 94
      %v1889 = vpop.permute.xlu0 %1888
      %1890 = vrot.lane.b32.xlu0 %v1861, 94
      %v1891 = vpop.permute.xlu0 %1890
      %1892 = vrot.lane.b32.xlu0 %v1862, 94
      %v1893 = vpop.permute.xlu0 %1892
      %1894 = vrot.lane.b32.xlu0 %v1863, 94
      %v1895 = vpop.permute.xlu0 %1894
      %1896 = vrot.lane.b32.xlu0 %v1864, 94
      %v1897 = vpop.permute.xlu0 %1896
      %1898 = vrot.lane.b32.xlu0 %v1865, 94
      %v1899 = vpop.permute.xlu0 %1898
      %1900 = vrot.lane.b32.xlu0 %v1866, 94
      %v1901 = vpop.permute.xlu0 %1900
      %1902 = vrot.lane.b32.xlu0 %v1867, 94
      %v1903 = vpop.permute.xlu0 %1902
      %v1904 = vsel %vm1806, %v1881, %v1883
      %v1905 = vsel %vm1806, %v1883, %v1885
      %v1906 = vsel %vm1806, %v1887, %v1889
      %v1907 = vsel %vm1806, %v1889, %v1891
      %v1908 = vsel %vm1806, %v1893, %v1895
      %v1909 = vsel %vm1806, %v1895, %v1897
      %v1910 = vsel %vm1806, %v1899, %v1901
      %v1911 = vsel %vm1806, %v1901, %v1903
      %v1920 = vadd.f32 %v1725, %v1904
      %v1921 = vadd.f32 %v1726, %v1905
      %v1922 = vadd.f32 %v1727, %v1906
      %v1923 = vadd.f32 %v1728, %v1907
      %v1924 = vadd.f32 %v1729, %v1908
      %v1925 = vadd.f32 %v1730, %v1909
      %v1926 = vadd.f32 %v1731, %v1910
      %v1927 = vadd.f32 %v1732, %v1911
      %v1928 = vadd.f32 %v1823, %v1920
      %v1929 = vadd.f32 %v1824, %v1921
      %v1930 = vadd.f32 %v1825, %v1922
      %v1931 = vadd.f32 %v1826, %v1923
      %v1932 = vadd.f32 %v1827, %v1924
      %v1933 = vadd.f32 %v1828, %v1925
      %v1934 = vadd.f32 %v1829, %v1926
      %v1935 = vadd.f32 %v1830, %v1927
      %v1944 = vrot.slane %v1929, 6
      %v1945 = vrot.slane %v1931, 6
      %v1946 = vrot.slane %v1933, 6
      %v1947 = vrot.slane %v1935, 6
      %vm1948 = vcmask 1041408
      %v1949 = vsel %vm1948, %v1928, %v1944
      %v1950 = vsel %vm1948, %v1930, %v1945
      %v1951 = vsel %vm1948, %v1932, %v1946
      %v1952 = vsel %vm1948, %v1934, %v1947
      %1957 = vst [vmem:[%s170] sm:$0xf] %v1949
      %1958 = vst [vmem:[%s170 + $0x4] sm:$0xf] %v1950
      %1959 = vst [vmem:[%s170 + $0x8] sm:$0xf] %v1951
      %1960 = vst [vmem:[%s170 + $0xc] sm:$0xf] %v1952
      %p1961 = scmp.lt.s32.totalorder %s14, 1
      %s1962 = scalar_select %p1961, %s14, 1
      %s1963 = smul.addr %s1962, 8
      %s1964 = smul.addr %s1963, 2
      %s1965 = scalar_lea.vmem %s3, %s1964
      // Predicated region
      $region33: #{grouped_conv2d.1} parent=31 // pred_check
        %p1966 = pneg %p100
      $region34: #{grouped_conv2d.1} parent=31 // pred_check_branch
        %1968 = sbr.rel (%p1966) target = $region36
      $region35: #{grouped_conv2d.1} parent=31 // pred_region
        _
      $region36: #{grouped_conv2d.1} parent=31 // pred_fallthru
        _
    $region32: #{grouped_conv2d.1} parent=5 // pred_fallthru
      _
    %p1969 = scmp.le.s32.totalorder 2, %s9
    // Predicated region
    $region37: #{grouped_conv2d.1} parent=5 // pred_check
      %p1970 = pneg %p1969
    $region38: #{grouped_conv2d.1} parent=5 // pred_check_branch
      %1972 = sbr.rel (%p1970) target = $region40
    $region39: #{grouped_conv2d.1} parent=5 // pred_region
      %s1973 = ssub.s32 %s9, 2
      // Predicated region
      $region41: #{grouped_conv2d.1} parent=39 // pred_check
        %p1974 = pneg %p106
      $region42: #{grouped_conv2d.1} parent=39 // pred_check_branch
        %1976 = sbr.rel (%p1974) target = $region44
      $region43: #{grouped_conv2d.1} parent=39 // pred_region
        %p1977 = scmp.lt.s32.totalorder %s15, 1
        %s1978 = scalar_select %p1977, %s15, 1
        %s1979 = smul.addr %s1978, 8
        %s1980 = smul.addr %s1979, 2
        %s1981 = scalar_lea.vmem %s3, %s1980
      $region44: #{grouped_conv2d.1} parent=39 // pred_fallthru
        _
    $region40: #{grouped_conv2d.1} parent=5 // pred_fallthru
      _
  $region6: #{grouped_conv2d.1} parent=0 // loop_footer
    %s13 = sadd.s32 1, %s9
  $region7: #{grouped_conv2d.1} parent=0 // loop_footer_branch
    %8 = sbr.rel target = $region3
  $region8: #{grouped_conv2d.1} parent=0 // loop_exit
    _

</llo_original>
